<compile_context>
chip_gen: v5e
topology: v5e:2x2
jax: 0.10.0
libtpu: 0.0.40
codegen_flags: <defaults>
</compile_context>

<pallas_src>
import functools

import jax
import jax.numpy as jnp
from jax import lax
from jax.experimental import pallas as pl
from jax.experimental.pallas import tpu as pltpu


def _round_up(v, m):
    return ((v + m - 1) // m) * m


def _bigru_kernel(x_ref, wih_ref, whh_ref, bih_ref, bhn_ref, out_ref):
    """Fused bidirectional GRU over the whole (small) sequence in VMEM.

    x_ref:   (T*Bp, 2C) f32  row t*Bp+b = [x[t, b] | x[T-1-t, b]]
    wih_ref: (2C, 3G)   f32  packed input weights; per gate: fwd lanes 0:C, bwd C:2C
    whh_ref: (G, 3G)    f32  packed recurrent weights (block-diag per gate; rows 2C:G zero)
    bih_ref: (1, 3G)    f32  b_ih with b_hr/b_hz folded in (n-gate column holds b_in only)
    bhn_ref: (1, G)     f32  b_hn (kept separate: sits inside r * (W_hn h + b_hn))
    out_ref: (T, Bp, G)      step-t hidden: fwd in lanes 0:C, bwd (for input time T-1-t)
                             in lanes C:2C, rest zero padding
    """
    T, Bp, G = out_ref.shape

    # ---- hoisted input projection: both directions, all timesteps, one matmul ----
    gx_all = (jnp.dot(x_ref[...], wih_ref[...], preferred_element_type=jnp.float32)
              + bih_ref[...])                                   # (T*Bp, 3G) SSA value

    # hoist the per-step broadcasts / weight load out of the unrolled loop
    bhn = jnp.broadcast_to(bhn_ref[...], (Bp, G))
    whh = whh_ref[...]

    h = jnp.zeros((Bp, G), jnp.float32)   # [h_fwd (0:C) | h_bwd (C:2C) | zero pad]

    # ---- fully unrolled serial recurrence (T is small and static) ----
    for t in range(T):
        gx = gx_all[t * Bp:(t + 1) * Bp, :]                     # (Bp, 3G), static slice
        gh = jnp.dot(h, whh, preferred_element_type=jnp.float32)  # (Bp, 3G)

        r = jax.nn.sigmoid(gx[:, 0:G] + gh[:, 0:G])
        z = jax.nn.sigmoid(gx[:, G:2 * G] + gh[:, G:2 * G])
        n = jnp.tanh(gx[:, 2 * G:3 * G] + r * (gh[:, 2 * G:3 * G] + bhn))
        h = n + z * (h - n)                                     # == (1-z)*n + z*h

        out_ref[t, :, :] = h.astype(out_ref.dtype)              # one lane-dense store


def pack_gru_params(params, ch):
    """One-time packing of PyTorch-layout GRU params (gate order r|z|n) into the fused
    kernel layout. Call OUTSIDE the per-call jitted path."""
    (wih_f, whh_f, bih_f, bhh_f, wih_b, whh_b, bih_b, bhh_b) = params
    C = ch
    two_c = 2 * C
    G = _round_up(two_c, 128)

    def gate_block(wf, wb, rows, cols):
        # block-diag [[wf.T, 0], [0, wb.T]] padded to (rows, cols)
        top = jnp.concatenate([wf.T, jnp.zeros((C, C), jnp.float32)], axis=1)
        bot = jnp.concatenate([jnp.zeros((C, C), jnp.float32), wb.T], axis=1)
        blk = jnp.concatenate([top, bot], axis=0)               # (2C, 2C)
        return jnp.pad(blk, ((0, rows - two_c), (0, cols - two_c)))

    def gate_bias(bf, bb):
        return jnp.pad(jnp.concatenate([bf, bb]), (0, G - two_c))

    wih_blocks, whh_blocks, bih_rows = [], [], []
    bhn_row = None
    for g in range(3):
        rs, re = g * C, (g + 1) * C
        wih_blocks.append(gate_block(wih_f[rs:re], wih_b[rs:re], two_c, G))
        whh_blocks.append(gate_block(whh_f[rs:re], whh_b[rs:re], G, G))
        if g < 2:
            # r/z gates: fold b_hh into the hoisted input-projection bias
            bih_rows.append(gate_bias(bih_f[rs:re] + bhh_f[rs:re],
                                      bih_b[rs:re] + bhh_b[rs:re]))
        else:
            # n gate: b_in hoisted, b_hn stays per-step inside r * (...)
            bih_rows.append(gate_bias(bih_f[rs:re], bih_b[rs:re]))
            bhn_row = gate_bias(bhh_f[rs:re], bhh_b[rs:re])

    wih_c = jnp.concatenate(wih_blocks, axis=1)                 # (2C, 3G)
    whh_c = jnp.concatenate(whh_blocks, axis=1)                 # (G, 3G)
    bih_c = jnp.concatenate(bih_rows)[None, :]                  # (1, 3G)
    bhn_c = bhn_row[None, :]                                    # (1, G)
    return wih_c, whh_c, bih_c, bhn_c


@jax.jit
def bidirectional_gru(x, packed):
    """x: (B, T, C) batch-first. packed: output of pack_gru_params.
    Returns (B, T, 2*C) — forward hidden in [..., :C], backward in [..., C:]."""
    wih_c, whh_c, bih_c, bhn_c = packed
    B, T, C = x.shape
    two_c = 2 * C
    Bp = _round_up(B, 8)          # full sublane group
    G = bhn_c.shape[1]            # per-gate lane stride (128-aligned)

    xt = jnp.transpose(x, (1, 0, 2)).astype(jnp.float32)        # (T, B, C) time-major
    x2 = jnp.concatenate([xt, xt[::-1]], axis=-1)               # (T, B, 2C): [fwd | bwd]
    if Bp != B:
        x2 = jnp.pad(x2, ((0, 0), (0, Bp - B), (0, 0)))
    x2 = x2.reshape(T * Bp, two_c)

    vmem = pl.BlockSpec(memory_space=pltpu.MemorySpace.VMEM)
    y = pl.pallas_call(
        _bigru_kernel,
        out_shape=jax.ShapeDtypeStruct((T, Bp, G), jnp.float32),
        in_specs=[vmem] * 5,
        out_specs=vmem,
    )(x2, wih_c, whh_c, bih_c, bhn_c)

    # Undo the kernel's lane-dense padded layout: fwd half is for time t, bwd half is
    # for input time T-1-t (reverse in time), then strip padding and go batch-first.
    out = jnp.concatenate([y[:, :B, 0:C], y[::-1, :B, C:two_c]], axis=-1)  # (T, B, 2C)
    return jnp.transpose(out, (1, 0, 2)).astype(x.dtype)


def init_gru_params(key, ch):
    """PyTorch-style init: U(-1/sqrt(H), 1/sqrt(H)), gate order r|z|n, PyTorch layout.

    Returns (w_ih_f (3C,C), w_hh_f (3C,C), b_ih_f (3C,), b_hh_f (3C,),
             w_ih_b, w_hh_b, b_ih_b, b_hh_b).
    """
    bound = 1.0 / jnp.sqrt(jnp.float32(ch))
    keys = jax.random.split(key, 8)

    def u(k, shape):
        return jax.random.uniform(k, shape, jnp.float32, -bound, bound)

    params = []
    for d in range(2):  # forward, backward directions
        params += [u(keys[4 * d + 0], (3 * ch, ch)),
                   u(keys[4 * d + 1], (3 * ch, ch)),
                   u(keys[4 * d + 2], (3 * ch,)),
                   u(keys[4 * d + 3], (3 * ch,))]
    return tuple(params)


def gru_reference(x, params):
    """Pure-JAX reference (lax.scan) matching PyTorch bidirectional GRU semantics."""
    B, T, C = x.shape
    (wih_f, whh_f, bih_f, bhh_f, wih_b, whh_b, bih_b, bhh_b) = params

    def cell(h, x_t, wih, whh, bih, bhh):
        gx = x_t @ wih.T + bih
        gh = h @ whh.T + bhh
        r = jax.nn.sigmoid(gx[:, 0:C] + gh[:, 0:C])
        z = jax.nn.sigmoid(gx[:, C:2 * C] + gh[:, C:2 * C])
        n = jnp.tanh(gx[:, 2 * C:3 * C] + r * gh[:, 2 * C:3 * C])
        h_new = (1.0 - z) * n + z * h
        return h_new, h_new

    xt = jnp.transpose(x, (1, 0, 2))  # (T, B, C)
    h0 = jnp.zeros((B, C), jnp.float32)
    _, out_f = lax.scan(functools.partial(cell, wih=wih_f, whh=whh_f, bih=bih_f, bhh=bhh_f),
                        h0, xt)
    _, out_b_rev = lax.scan(functools.partial(cell, wih=wih_b, whh=whh_b, bih=bih_b, bhh=bhh_b),
                            h0, xt[::-1])
    out_b = out_b_rev[::-1]
    out = jnp.concatenate([out_f, out_b], axis=-1)   # (T, B, 2C)
    return jnp.transpose(out, (1, 0, 2))


if __name__ == "__main__":
    B, T, CH = 2, 8, 32  # batch, sequence length, channels (= hidden size)

    key = jax.random.PRNGKey(0)
    k_x, k_p = jax.random.split(key)
    x = jax.random.normal(k_x, (B, T, CH), jnp.float32)
    params = init_gru_params(k_p, CH)

    # One-time weight packing, outside the per-call jitted path.
    packed = jax.tree_util.tree_map(jax.block_until_ready, pack_gru_params(params, CH))

    out = jax.block_until_ready(bidirectional_gru(x, packed))
    assert out.shape == (B, T, 2 * CH), out.shape

    ref = jax.block_until_ready(gru_reference(x, params))
    err = jnp.max(jnp.abs(out - ref))
    assert jnp.allclose(out, ref, atol=1e-4, rtol=1e-4), f"max abs err {err}"

    print("KERNEL_OK")
</pallas_src>

<mosaic_0001>
module attributes {stable_mosaic.version = 11 : i64} {
  func.func @_bigru_kernel(%arg0: memref<64x64xf32, #tpu.memory_space<vmem>>, %arg1: memref<64x384xf32, #tpu.memory_space<vmem>>, %arg2: memref<128x384xf32, #tpu.memory_space<vmem>>, %arg3: memref<1x384xf32, #tpu.memory_space<vmem>>, %arg4: memref<1x128xf32, #tpu.memory_space<vmem>>, %arg5: memref<8x8x128xf32, #tpu.memory_space<vmem>>) attributes {dimension_semantics = [], scalar_prefetch = 0 : i64, scratch_operands = 0 : i64, tpu.core_type = #tpu.core_type<tc>} {
    %c0 = arith.constant 0 : index
    %c0_0 = arith.constant 0 : index
    %0 = vector.load %arg0[%c0, %c0_0] : memref<64x64xf32, #tpu.memory_space<vmem>>, vector<64x64xf32>
    %c0_1 = arith.constant 0 : index
    %c0_2 = arith.constant 0 : index
    %1 = vector.load %arg1[%c0_1, %c0_2] : memref<64x384xf32, #tpu.memory_space<vmem>>, vector<64x384xf32>
    %cst = arith.constant dense<0.000000e+00> : vector<64x384xf32>
    %2 = tpu.matmul %0, %1, %cst {dimension_numbers = #tpu.dot_dimension_numbers<[1], [0], [0], [1], [0, 0, 1, 1], [], []>} : vector<64x64xf32>, vector<64x384xf32>, vector<64x384xf32> -> vector<64x384xf32>
    %c0_3 = arith.constant 0 : index
    %c0_4 = arith.constant 0 : index
    %3 = vector.load %arg3[%c0_3, %c0_4] : memref<1x384xf32, #tpu.memory_space<vmem>>, vector<1x384xf32>
    %4 = vector.broadcast %3 : vector<1x384xf32> to vector<64x384xf32>
    %5 = arith.addf %2, %4 : vector<64x384xf32>
    %c0_5 = arith.constant 0 : index
    %c0_6 = arith.constant 0 : index
    %6 = vector.load %arg4[%c0_5, %c0_6] : memref<1x128xf32, #tpu.memory_space<vmem>>, vector<1x128xf32>
    %7 = vector.shape_cast %6 : vector<1x128xf32> to vector<1x128xf32>
    %8 = vector.broadcast %7 : vector<1x128xf32> to vector<8x128xf32>
    %c0_7 = arith.constant 0 : index
    %c0_8 = arith.constant 0 : index
    %9 = vector.load %arg2[%c0_7, %c0_8] : memref<128x384xf32, #tpu.memory_space<vmem>>, vector<128x384xf32>
    %cst_9 = arith.constant 0.000000e+00 : f32
    %10 = vector.broadcast %cst_9 : f32 to vector<8x128xf32>
    %11 = vector.extract_strided_slice %5 {offsets = [0, 0], sizes = [8, 384], strides = [1, 1]} : vector<64x384xf32> to vector<8x384xf32>
    %cst_10 = arith.constant dense<0.000000e+00> : vector<8x384xf32>
    %12 = tpu.matmul %10, %9, %cst_10 {dimension_numbers = #tpu.dot_dimension_numbers<[1], [0], [0], [1], [0, 0, 1, 1], [], []>} : vector<8x128xf32>, vector<128x384xf32>, vector<8x384xf32> -> vector<8x384xf32>
    %13 = vector.extract_strided_slice %11 {offsets = [0, 0], sizes = [8, 128], strides = [1, 1]} : vector<8x384xf32> to vector<8x128xf32>
    %14 = vector.extract_strided_slice %12 {offsets = [0, 0], sizes = [8, 128], strides = [1, 1]} : vector<8x384xf32> to vector<8x128xf32>
    %15 = arith.addf %13, %14 : vector<8x128xf32>
    %16 = arith.negf %15 : vector<8x128xf32>
    %17 = math.exp %16 : vector<8x128xf32>
    %cst_11 = arith.constant 1.000000e+00 : f32
    %18 = vector.broadcast %cst_11 : f32 to vector<8x128xf32>
    %19 = arith.addf %18, %17 : vector<8x128xf32>
    %20 = arith.divf %18, %19 : vector<8x128xf32>
    %21 = vector.extract_strided_slice %11 {offsets = [0, 128], sizes = [8, 128], strides = [1, 1]} : vector<8x384xf32> to vector<8x128xf32>
    %22 = vector.extract_strided_slice %12 {offsets = [0, 128], sizes = [8, 128], strides = [1, 1]} : vector<8x384xf32> to vector<8x128xf32>
    %23 = arith.addf %21, %22 : vector<8x128xf32>
    %24 = arith.negf %23 : vector<8x128xf32>
    %25 = math.exp %24 : vector<8x128xf32>
    %cst_12 = arith.constant 1.000000e+00 : f32
    %26 = vector.broadcast %cst_12 : f32 to vector<8x128xf32>
    %27 = arith.addf %26, %25 : vector<8x128xf32>
    %28 = arith.divf %26, %27 : vector<8x128xf32>
    %29 = vector.extract_strided_slice %11 {offsets = [0, 256], sizes = [8, 128], strides = [1, 1]} : vector<8x384xf32> to vector<8x128xf32>
    %30 = vector.extract_strided_slice %12 {offsets = [0, 256], sizes = [8, 128], strides = [1, 1]} : vector<8x384xf32> to vector<8x128xf32>
    %31 = arith.addf %30, %8 : vector<8x128xf32>
    %32 = arith.mulf %20, %31 : vector<8x128xf32>
    %33 = arith.addf %29, %32 : vector<8x128xf32>
    %34 = math.tanh %33 : vector<8x128xf32>
    %35 = arith.subf %10, %34 : vector<8x128xf32>
    %36 = arith.mulf %28, %35 : vector<8x128xf32>
    %37 = arith.addf %34, %36 : vector<8x128xf32>
    %c0_13 = arith.constant 0 : index
    %c0_14 = arith.constant 0 : index
    %c0_15 = arith.constant 0 : index
    %38 = vector.load %arg5[%c0_13, %c0_14, %c0_15] : memref<8x8x128xf32, #tpu.memory_space<vmem>>, vector<1x8x128xf32>
    %39 = vector.shape_cast %38 : vector<1x8x128xf32> to vector<8x128xf32>
    %40 = vector.shape_cast %37 : vector<8x128xf32> to vector<1x8x128xf32>
    tpu.vector_store %arg5[%c0_13, %c0_14, %c0_15], %40 {strides = array<i32>} : memref<8x8x128xf32, #tpu.memory_space<vmem>>, vector<1x8x128xf32>,
    %41 = vector.extract_strided_slice %5 {offsets = [8, 0], sizes = [8, 384], strides = [1, 1]} : vector<64x384xf32> to vector<8x384xf32>
    %cst_16 = arith.constant dense<0.000000e+00> : vector<8x384xf32>
    %42 = tpu.matmul %37, %9, %cst_16 {dimension_numbers = #tpu.dot_dimension_numbers<[1], [0], [0], [1], [0, 0, 1, 1], [], []>} : vector<8x128xf32>, vector<128x384xf32>, vector<8x384xf32> -> vector<8x384xf32>
    %43 = vector.extract_strided_slice %41 {offsets = [0, 0], sizes = [8, 128], strides = [1, 1]} : vector<8x384xf32> to vector<8x128xf32>
    %44 = vector.extract_strided_slice %42 {offsets = [0, 0], sizes = [8, 128], strides = [1, 1]} : vector<8x384xf32> to vector<8x128xf32>
    %45 = arith.addf %43, %44 : vector<8x128xf32>
    %46 = arith.negf %45 : vector<8x128xf32>
    %47 = math.exp %46 : vector<8x128xf32>
    %cst_17 = arith.constant 1.000000e+00 : f32
    %48 = vector.broadcast %cst_17 : f32 to vector<8x128xf32>
    %49 = arith.addf %48, %47 : vector<8x128xf32>
    %50 = arith.divf %48, %49 : vector<8x128xf32>
    %51 = vector.extract_strided_slice %41 {offsets = [0, 128], sizes = [8, 128], strides = [1, 1]} : vector<8x384xf32> to vector<8x128xf32>
    %52 = vector.extract_strided_slice %42 {offsets = [0, 128], sizes = [8, 128], strides = [1, 1]} : vector<8x384xf32> to vector<8x128xf32>
    %53 = arith.addf %51, %52 : vector<8x128xf32>
    %54 = arith.negf %53 : vector<8x128xf32>
    %55 = math.exp %54 : vector<8x128xf32>
    %cst_18 = arith.constant 1.000000e+00 : f32
    %56 = vector.broadcast %cst_18 : f32 to vector<8x128xf32>
    %57 = arith.addf %56, %55 : vector<8x128xf32>
    %58 = arith.divf %56, %57 : vector<8x128xf32>
    %59 = vector.extract_strided_slice %41 {offsets = [0, 256], sizes = [8, 128], strides = [1, 1]} : vector<8x384xf32> to vector<8x128xf32>
    %60 = vector.extract_strided_slice %42 {offsets = [0, 256], sizes = [8, 128], strides = [1, 1]} : vector<8x384xf32> to vector<8x128xf32>
    %61 = arith.addf %60, %8 : vector<8x128xf32>
    %62 = arith.mulf %50, %61 : vector<8x128xf32>
    %63 = arith.addf %59, %62 : vector<8x128xf32>
    %64 = math.tanh %63 : vector<8x128xf32>
    %65 = arith.subf %37, %64 : vector<8x128xf32>
    %66 = arith.mulf %58, %65 : vector<8x128xf32>
    %67 = arith.addf %64, %66 : vector<8x128xf32>
    %c1 = arith.constant 1 : index
    %c0_19 = arith.constant 0 : index
    %c0_20 = arith.constant 0 : index
    %68 = vector.load %arg5[%c1, %c0_19, %c0_20] : memref<8x8x128xf32, #tpu.memory_space<vmem>>, vector<1x8x128xf32>
    %69 = vector.shape_cast %68 : vector<1x8x128xf32> to vector<8x128xf32>
    %70 = vector.shape_cast %67 : vector<8x128xf32> to vector<1x8x128xf32>
    tpu.vector_store %arg5[%c1, %c0_19, %c0_20], %70 {strides = array<i32>} : memref<8x8x128xf32, #tpu.memory_space<vmem>>, vector<1x8x128xf32>,
    %71 = vector.extract_strided_slice %5 {offsets = [16, 0], sizes = [8, 384], strides = [1, 1]} : vector<64x384xf32> to vector<8x384xf32>
    %cst_21 = arith.constant dense<0.000000e+00> : vector<8x384xf32>
    %72 = tpu.matmul %67, %9, %cst_21 {dimension_numbers = #tpu.dot_dimension_numbers<[1], [0], [0], [1], [0, 0, 1, 1], [], []>} : vector<8x128xf32>, vector<128x384xf32>, vector<8x384xf32> -> vector<8x384xf32>
    %73 = vector.extract_strided_slice %71 {offsets = [0, 0], sizes = [8, 128], strides = [1, 1]} : vector<8x384xf32> to vector<8x128xf32>
    %74 = vector.extract_strided_slice %72 {offsets = [0, 0], sizes = [8, 128], strides = [1, 1]} : vector<8x384xf32> to vector<8x128xf32>
    %75 = arith.addf %73, %74 : vector<8x128xf32>
    %76 = arith.negf %75 : vector<8x128xf32>
    %77 = math.exp %76 : vector<8x128xf32>
    %cst_22 = arith.constant 1.000000e+00 : f32
    %78 = vector.broadcast %cst_22 : f32 to vector<8x128xf32>
    %79 = arith.addf %78, %77 : vector<8x128xf32>
    %80 = arith.divf %78, %79 : vector<8x128xf32>
    %81 = vector.extract_strided_slice %71 {offsets = [0, 128], sizes = [8, 128], strides = [1, 1]} : vector<8x384xf32> to vector<8x128xf32>
    %82 = vector.extract_strided_slice %72 {offsets = [0, 128], sizes = [8, 128], strides = [1, 1]} : vector<8x384xf32> to vector<8x128xf32>
    %83 = arith.addf %81, %82 : vector<8x128xf32>
    %84 = arith.negf %83 : vector<8x128xf32>
    %85 = math.exp %84 : vector<8x128xf32>
    %cst_23 = arith.constant 1.000000e+00 : f32
    %86 = vector.broadcast %cst_23 : f32 to vector<8x128xf32>
    %87 = arith.addf %86, %85 : vector<8x128xf32>
    %88 = arith.divf %86, %87 : vector<8x128xf32>
    %89 = vector.extract_strided_slice %71 {offsets = [0, 256], sizes = [8, 128], strides = [1, 1]} : vector<8x384xf32> to vector<8x128xf32>
    %90 = vector.extract_strided_slice %72 {offsets = [0, 256], sizes = [8, 128], strides = [1, 1]} : vector<8x384xf32> to vector<8x128xf32>
    %91 = arith.addf %90, %8 : vector<8x128xf32>
    %92 = arith.mulf %80, %91 : vector<8x128xf32>
    %93 = arith.addf %89, %92 : vector<8x128xf32>
    %94 = math.tanh %93 : vector<8x128xf32>
    %95 = arith.subf %67, %94 : vector<8x128xf32>
    %96 = arith.mulf %88, %95 : vector<8x128xf32>
    %97 = arith.addf %94, %96 : vector<8x128xf32>
    %c2 = arith.constant 2 : index
    %c0_24 = arith.constant 0 : index
    %c0_25 = arith.constant 0 : index
    %98 = vector.load %arg5[%c2, %c0_24, %c0_25] : memref<8x8x128xf32, #tpu.memory_space<vmem>>, vector<1x8x128xf32>
    %99 = vector.shape_cast %98 : vector<1x8x128xf32> to vector<8x128xf32>
    %100 = vector.shape_cast %97 : vector<8x128xf32> to vector<1x8x128xf32>
    tpu.vector_store %arg5[%c2, %c0_24, %c0_25], %100 {strides = array<i32>} : memref<8x8x128xf32, #tpu.memory_space<vmem>>, vector<1x8x128xf32>,
    %101 = vector.extract_strided_slice %5 {offsets = [24, 0], sizes = [8, 384], strides = [1, 1]} : vector<64x384xf32> to vector<8x384xf32>
    %cst_26 = arith.constant dense<0.000000e+00> : vector<8x384xf32>
    %102 = tpu.matmul %97, %9, %cst_26 {dimension_numbers = #tpu.dot_dimension_numbers<[1], [0], [0], [1], [0, 0, 1, 1], [], []>} : vector<8x128xf32>, vector<128x384xf32>, vector<8x384xf32> -> vector<8x384xf32>
    %103 = vector.extract_strided_slice %101 {offsets = [0, 0], sizes = [8, 128], strides = [1, 1]} : vector<8x384xf32> to vector<8x128xf32>
    %104 = vector.extract_strided_slice %102 {offsets = [0, 0], sizes = [8, 128], strides = [1, 1]} : vector<8x384xf32> to vector<8x128xf32>
    %105 = arith.addf %103, %104 : vector<8x128xf32>
    %106 = arith.negf %105 : vector<8x128xf32>
    %107 = math.exp %106 : vector<8x128xf32>
    %cst_27 = arith.constant 1.000000e+00 : f32
    %108 = vector.broadcast %cst_27 : f32 to vector<8x128xf32>
    %109 = arith.addf %108, %107 : vector<8x128xf32>
    %110 = arith.divf %108, %109 : vector<8x128xf32>
    %111 = vector.extract_strided_slice %101 {offsets = [0, 128], sizes = [8, 128], strides = [1, 1]} : vector<8x384xf32> to vector<8x128xf32>
    %112 = vector.extract_strided_slice %102 {offsets = [0, 128], sizes = [8, 128], strides = [1, 1]} : vector<8x384xf32> to vector<8x128xf32>
    %113 = arith.addf %111, %112 : vector<8x128xf32>
    %114 = arith.negf %113 : vector<8x128xf32>
    %115 = math.exp %114 : vector<8x128xf32>
    %cst_28 = arith.constant 1.000000e+00 : f32
    %116 = vector.broadcast %cst_28 : f32 to vector<8x128xf32>
    %117 = arith.addf %116, %115 : vector<8x128xf32>
    %118 = arith.divf %116, %117 : vector<8x128xf32>
    %119 = vector.extract_strided_slice %101 {offsets = [0, 256], sizes = [8, 128], strides = [1, 1]} : vector<8x384xf32> to vector<8x128xf32>
    %120 = vector.extract_strided_slice %102 {offsets = [0, 256], sizes = [8, 128], strides = [1, 1]} : vector<8x384xf32> to vector<8x128xf32>
    %121 = arith.addf %120, %8 : vector<8x128xf32>
    %122 = arith.mulf %110, %121 : vector<8x128xf32>
    %123 = arith.addf %119, %122 : vector<8x128xf32>
    %124 = math.tanh %123 : vector<8x128xf32>
    %125 = arith.subf %97, %124 : vector<8x128xf32>
    %126 = arith.mulf %118, %125 : vector<8x128xf32>
    %127 = arith.addf %124, %126 : vector<8x128xf32>
    %c3 = arith.constant 3 : index
    %c0_29 = arith.constant 0 : index
    %c0_30 = arith.constant 0 : index
    %128 = vector.load %arg5[%c3, %c0_29, %c0_30] : memref<8x8x128xf32, #tpu.memory_space<vmem>>, vector<1x8x128xf32>
    %129 = vector.shape_cast %128 : vector<1x8x128xf32> to vector<8x128xf32>
    %130 = vector.shape_cast %127 : vector<8x128xf32> to vector<1x8x128xf32>
    tpu.vector_store %arg5[%c3, %c0_29, %c0_30], %130 {strides = array<i32>} : memref<8x8x128xf32, #tpu.memory_space<vmem>>, vector<1x8x128xf32>,
    %131 = vector.extract_strided_slice %5 {offsets = [32, 0], sizes = [8, 384], strides = [1, 1]} : vector<64x384xf32> to vector<8x384xf32>
    %cst_31 = arith.constant dense<0.000000e+00> : vector<8x384xf32>
    %132 = tpu.matmul %127, %9, %cst_31 {dimension_numbers = #tpu.dot_dimension_numbers<[1], [0], [0], [1], [0, 0, 1, 1], [], []>} : vector<8x128xf32>, vector<128x384xf32>, vector<8x384xf32> -> vector<8x384xf32>
    %133 = vector.extract_strided_slice %131 {offsets = [0, 0], sizes = [8, 128], strides = [1, 1]} : vector<8x384xf32> to vector<8x128xf32>
    %134 = vector.extract_strided_slice %132 {offsets = [0, 0], sizes = [8, 128], strides = [1, 1]} : vector<8x384xf32> to vector<8x128xf32>
    %135 = arith.addf %133, %134 : vector<8x128xf32>
    %136 = arith.negf %135 : vector<8x128xf32>
    %137 = math.exp %136 : vector<8x128xf32>
    %cst_32 = arith.constant 1.000000e+00 : f32
    %138 = vector.broadcast %cst_32 : f32 to vector<8x128xf32>
    %139 = arith.addf %138, %137 : vector<8x128xf32>
    %140 = arith.divf %138, %139 : vector<8x128xf32>
    %141 = vector.extract_strided_slice %131 {offsets = [0, 128], sizes = [8, 128], strides = [1, 1]} : vector<8x384xf32> to vector<8x128xf32>
    %142 = vector.extract_strided_slice %132 {offsets = [0, 128], sizes = [8, 128], strides = [1, 1]} : vector<8x384xf32> to vector<8x128xf32>
    %143 = arith.addf %141, %142 : vector<8x128xf32>
    %144 = arith.negf %143 : vector<8x128xf32>
    %145 = math.exp %144 : vector<8x128xf32>
    %cst_33 = arith.constant 1.000000e+00 : f32
    %146 = vector.broadcast %cst_33 : f32 to vector<8x128xf32>
    %147 = arith.addf %146, %145 : vector<8x128xf32>
    %148 = arith.divf %146, %147 : vector<8x128xf32>
    %149 = vector.extract_strided_slice %131 {offsets = [0, 256], sizes = [8, 128], strides = [1, 1]} : vector<8x384xf32> to vector<8x128xf32>
    %150 = vector.extract_strided_slice %132 {offsets = [0, 256], sizes = [8, 128], strides = [1, 1]} : vector<8x384xf32> to vector<8x128xf32>
    %151 = arith.addf %150, %8 : vector<8x128xf32>
    %152 = arith.mulf %140, %151 : vector<8x128xf32>
    %153 = arith.addf %149, %152 : vector<8x128xf32>
    %154 = math.tanh %153 : vector<8x128xf32>
    %155 = arith.subf %127, %154 : vector<8x128xf32>
    %156 = arith.mulf %148, %155 : vector<8x128xf32>
    %157 = arith.addf %154, %156 : vector<8x128xf32>
    %c4 = arith.constant 4 : index
    %c0_34 = arith.constant 0 : index
    %c0_35 = arith.constant 0 : index
    %158 = vector.load %arg5[%c4, %c0_34, %c0_35] : memref<8x8x128xf32, #tpu.memory_space<vmem>>, vector<1x8x128xf32>
    %159 = vector.shape_cast %158 : vector<1x8x128xf32> to vector<8x128xf32>
    %160 = vector.shape_cast %157 : vector<8x128xf32> to vector<1x8x128xf32>
    tpu.vector_store %arg5[%c4, %c0_34, %c0_35], %160 {strides = array<i32>} : memref<8x8x128xf32, #tpu.memory_space<vmem>>, vector<1x8x128xf32>,
    %161 = vector.extract_strided_slice %5 {offsets = [40, 0], sizes = [8, 384], strides = [1, 1]} : vector<64x384xf32> to vector<8x384xf32>
    %cst_36 = arith.constant dense<0.000000e+00> : vector<8x384xf32>
    %162 = tpu.matmul %157, %9, %cst_36 {dimension_numbers = #tpu.dot_dimension_numbers<[1], [0], [0], [1], [0, 0, 1, 1], [], []>} : vector<8x128xf32>, vector<128x384xf32>, vector<8x384xf32> -> vector<8x384xf32>
    %163 = vector.extract_strided_slice %161 {offsets = [0, 0], sizes = [8, 128], strides = [1, 1]} : vector<8x384xf32> to vector<8x128xf32>
    %164 = vector.extract_strided_slice %162 {offsets = [0, 0], sizes = [8, 128], strides = [1, 1]} : vector<8x384xf32> to vector<8x128xf32>
    %165 = arith.addf %163, %164 : vector<8x128xf32>
    %166 = arith.negf %165 : vector<8x128xf32>
    %167 = math.exp %166 : vector<8x128xf32>
    %cst_37 = arith.constant 1.000000e+00 : f32
    %168 = vector.broadcast %cst_37 : f32 to vector<8x128xf32>
    %169 = arith.addf %168, %167 : vector<8x128xf32>
    %170 = arith.divf %168, %169 : vector<8x128xf32>
    %171 = vector.extract_strided_slice %161 {offsets = [0, 128], sizes = [8, 128], strides = [1, 1]} : vector<8x384xf32> to vector<8x128xf32>
    %172 = vector.extract_strided_slice %162 {offsets = [0, 128], sizes = [8, 128], strides = [1, 1]} : vector<8x384xf32> to vector<8x128xf32>
    %173 = arith.addf %171, %172 : vector<8x128xf32>
    %174 = arith.negf %173 : vector<8x128xf32>
    %175 = math.exp %174 : vector<8x128xf32>
    %cst_38 = arith.constant 1.000000e+00 : f32
    %176 = vector.broadcast %cst_38 : f32 to vector<8x128xf32>
    %177 = arith.addf %176, %175 : vector<8x128xf32>
    %178 = arith.divf %176, %177 : vector<8x128xf32>
    %179 = vector.extract_strided_slice %161 {offsets = [0, 256], sizes = [8, 128], strides = [1, 1]} : vector<8x384xf32> to vector<8x128xf32>
    %180 = vector.extract_strided_slice %162 {offsets = [0, 256], sizes = [8, 128], strides = [1, 1]} : vector<8x384xf32> to vector<8x128xf32>
    %181 = arith.addf %180, %8 : vector<8x128xf32>
    %182 = arith.mulf %170, %181 : vector<8x128xf32>
    %183 = arith.addf %179, %182 : vector<8x128xf32>
    %184 = math.tanh %183 : vector<8x128xf32>
    %185 = arith.subf %157, %184 : vector<8x128xf32>
    %186 = arith.mulf %178, %185 : vector<8x128xf32>
    %187 = arith.addf %184, %186 : vector<8x128xf32>
    %c5 = arith.constant 5 : index
    %c0_39 = arith.constant 0 : index
    %c0_40 = arith.constant 0 : index
    %188 = vector.load %arg5[%c5, %c0_39, %c0_40] : memref<8x8x128xf32, #tpu.memory_space<vmem>>, vector<1x8x128xf32>
    %189 = vector.shape_cast %188 : vector<1x8x128xf32> to vector<8x128xf32>
    %190 = vector.shape_cast %187 : vector<8x128xf32> to vector<1x8x128xf32>
    tpu.vector_store %arg5[%c5, %c0_39, %c0_40], %190 {strides = array<i32>} : memref<8x8x128xf32, #tpu.memory_space<vmem>>, vector<1x8x128xf32>,
    %191 = vector.extract_strided_slice %5 {offsets = [48, 0], sizes = [8, 384], strides = [1, 1]} : vector<64x384xf32> to vector<8x384xf32>
    %cst_41 = arith.constant dense<0.000000e+00> : vector<8x384xf32>
    %192 = tpu.matmul %187, %9, %cst_41 {dimension_numbers = #tpu.dot_dimension_numbers<[1], [0], [0], [1], [0, 0, 1, 1], [], []>} : vector<8x128xf32>, vector<128x384xf32>, vector<8x384xf32> -> vector<8x384xf32>
    %193 = vector.extract_strided_slice %191 {offsets = [0, 0], sizes = [8, 128], strides = [1, 1]} : vector<8x384xf32> to vector<8x128xf32>
    %194 = vector.extract_strided_slice %192 {offsets = [0, 0], sizes = [8, 128], strides = [1, 1]} : vector<8x384xf32> to vector<8x128xf32>
    %195 = arith.addf %193, %194 : vector<8x128xf32>
    %196 = arith.negf %195 : vector<8x128xf32>
    %197 = math.exp %196 : vector<8x128xf32>
    %cst_42 = arith.constant 1.000000e+00 : f32
    %198 = vector.broadcast %cst_42 : f32 to vector<8x128xf32>
    %199 = arith.addf %198, %197 : vector<8x128xf32>
    %200 = arith.divf %198, %199 : vector<8x128xf32>
    %201 = vector.extract_strided_slice %191 {offsets = [0, 128], sizes = [8, 128], strides = [1, 1]} : vector<8x384xf32> to vector<8x128xf32>
    %202 = vector.extract_strided_slice %192 {offsets = [0, 128], sizes = [8, 128], strides = [1, 1]} : vector<8x384xf32> to vector<8x128xf32>
    %203 = arith.addf %201, %202 : vector<8x128xf32>
    %204 = arith.negf %203 : vector<8x128xf32>
    %205 = math.exp %204 : vector<8x128xf32>
    %cst_43 = arith.constant 1.000000e+00 : f32
    %206 = vector.broadcast %cst_43 : f32 to vector<8x128xf32>
    %207 = arith.addf %206, %205 : vector<8x128xf32>
    %208 = arith.divf %206, %207 : vector<8x128xf32>
    %209 = vector.extract_strided_slice %191 {offsets = [0, 256], sizes = [8, 128], strides = [1, 1]} : vector<8x384xf32> to vector<8x128xf32>
    %210 = vector.extract_strided_slice %192 {offsets = [0, 256], sizes = [8, 128], strides = [1, 1]} : vector<8x384xf32> to vector<8x128xf32>
    %211 = arith.addf %210, %8 : vector<8x128xf32>
    %212 = arith.mulf %200, %211 : vector<8x128xf32>
    %213 = arith.addf %209, %212 : vector<8x128xf32>
    %214 = math.tanh %213 : vector<8x128xf32>
    %215 = arith.subf %187, %214 : vector<8x128xf32>
    %216 = arith.mulf %208, %215 : vector<8x128xf32>
    %217 = arith.addf %214, %216 : vector<8x128xf32>
    %c6 = arith.constant 6 : index
    %c0_44 = arith.constant 0 : index
    %c0_45 = arith.constant 0 : index
    %218 = vector.load %arg5[%c6, %c0_44, %c0_45] : memref<8x8x128xf32, #tpu.memory_space<vmem>>, vector<1x8x128xf32>
    %219 = vector.shape_cast %218 : vector<1x8x128xf32> to vector<8x128xf32>
    %220 = vector.shape_cast %217 : vector<8x128xf32> to vector<1x8x128xf32>
    tpu.vector_store %arg5[%c6, %c0_44, %c0_45], %220 {strides = array<i32>} : memref<8x8x128xf32, #tpu.memory_space<vmem>>, vector<1x8x128xf32>,
    %221 = vector.extract_strided_slice %5 {offsets = [56, 0], sizes = [8, 384], strides = [1, 1]} : vector<64x384xf32> to vector<8x384xf32>
    %cst_46 = arith.constant dense<0.000000e+00> : vector<8x384xf32>
    %222 = tpu.matmul %217, %9, %cst_46 {dimension_numbers = #tpu.dot_dimension_numbers<[1], [0], [0], [1], [0, 0, 1, 1], [], []>} : vector<8x128xf32>, vector<128x384xf32>, vector<8x384xf32> -> vector<8x384xf32>
    %223 = vector.extract_strided_slice %221 {offsets = [0, 0], sizes = [8, 128], strides = [1, 1]} : vector<8x384xf32> to vector<8x128xf32>
    %224 = vector.extract_strided_slice %222 {offsets = [0, 0], sizes = [8, 128], strides = [1, 1]} : vector<8x384xf32> to vector<8x128xf32>
    %225 = arith.addf %223, %224 : vector<8x128xf32>
    %226 = arith.negf %225 : vector<8x128xf32>
    %227 = math.exp %226 : vector<8x128xf32>
    %cst_47 = arith.constant 1.000000e+00 : f32
    %228 = vector.broadcast %cst_47 : f32 to vector<8x128xf32>
    %229 = arith.addf %228, %227 : vector<8x128xf32>
    %230 = arith.divf %228, %229 : vector<8x128xf32>
    %231 = vector.extract_strided_slice %221 {offsets = [0, 128], sizes = [8, 128], strides = [1, 1]} : vector<8x384xf32> to vector<8x128xf32>
    %232 = vector.extract_strided_slice %222 {offsets = [0, 128], sizes = [8, 128], strides = [1, 1]} : vector<8x384xf32> to vector<8x128xf32>
    %233 = arith.addf %231, %232 : vector<8x128xf32>
    %234 = arith.negf %233 : vector<8x128xf32>
    %235 = math.exp %234 : vector<8x128xf32>
    %cst_48 = arith.constant 1.000000e+00 : f32
    %236 = vector.broadcast %cst_48 : f32 to vector<8x128xf32>
    %237 = arith.addf %236, %235 : vector<8x128xf32>
    %238 = arith.divf %236, %237 : vector<8x128xf32>
    %239 = vector.extract_strided_slice %221 {offsets = [0, 256], sizes = [8, 128], strides = [1, 1]} : vector<8x384xf32> to vector<8x128xf32>
    %240 = vector.extract_strided_slice %222 {offsets = [0, 256], sizes = [8, 128], strides = [1, 1]} : vector<8x384xf32> to vector<8x128xf32>
    %241 = arith.addf %240, %8 : vector<8x128xf32>
    %242 = arith.mulf %230, %241 : vector<8x128xf32>
    %243 = arith.addf %239, %242 : vector<8x128xf32>
    %244 = math.tanh %243 : vector<8x128xf32>
    %245 = arith.subf %217, %244 : vector<8x128xf32>
    %246 = arith.mulf %238, %245 : vector<8x128xf32>
    %247 = arith.addf %244, %246 : vector<8x128xf32>
    %c7 = arith.constant 7 : index
    %c0_49 = arith.constant 0 : index
    %c0_50 = arith.constant 0 : index
    %248 = vector.load %arg5[%c7, %c0_49, %c0_50] : memref<8x8x128xf32, #tpu.memory_space<vmem>>, vector<1x8x128xf32>
    %249 = vector.shape_cast %248 : vector<1x8x128xf32> to vector<8x128xf32>
    %250 = vector.shape_cast %247 : vector<8x128xf32> to vector<1x8x128xf32>
    tpu.vector_store %arg5[%c7, %c0_49, %c0_50], %250 {strides = array<i32>} : memref<8x8x128xf32, #tpu.memory_space<vmem>>, vector<1x8x128xf32>,
    return
  }
}

</mosaic_0001>

<llo_original>
// kernel: bidirectional_gru.1
$region0: #{bidirectional_gru.1}
  #allocation0 [shape = 'u32[]', space=smem, size = 0x4, offset = 0x4, fixed_abs, tag = 'smem constant byte address 0x4 - core index']
  #allocation1 [shape = 'u32[72,128]{1,0:T(1,128)}', space=vmem, size = 0x9000, scoped, tag = 'internal scratch']
  %s0 = inlined_call_operand.vmem [shape: f32[64,64], index: 0, kind: input, shape index: {}]
  %s1 = inlined_call_operand.hbm [shape: f32[64,384], index: 1, kind: input, shape index: {}]
  %s2 = inlined_call_operand.hbm [shape: f32[128,384], index: 2, kind: input, shape index: {}]
  %s3 = inlined_call_operand.vmem [shape: f32[1,384], index: 3, kind: input, shape index: {}]
  %s4 = inlined_call_operand.vmem [shape: f32[1,128], index: 4, kind: input, shape index: {}]
  %s5 = inlined_call_operand.vmem [shape: f32[8,8,128], index: 5, kind: output, shape index: {}]
  %s6 = sld [smem:[#allocation0]]
  $region38: #{bidirectional_gru.1} parent=0
    _
  %s8 = ssub.s32 1, %s6
  %s9 = scalar_select 0, %s8, %s6
  $region1: #{bidirectional_gru.1} parent=0
    #allocation2 [shape = 'u8[98304]{0}', space=vmem, size = 0x18000, scoped, tag = 'input window, operand 1, single buffered']
    #allocation3 [shape = 's32[1]{0}', space=sflag, size = 0x4, scoped, tag = 'scoped memory for bidirectional_gru.1']
    #allocation4 [shape = 'u8[196608]{0}', space=vmem, size = 0x30000, scoped, tag = 'input window, operand 2, single buffered']
    #allocation5 [shape = 's32[1]{0}', space=sflag, size = 0x4, scoped, tag = 'scoped memory for bidirectional_gru.1']
    %10 = vsyncpa [#allocation3], 0
    %11 = vsyncpa [#allocation5], 0
    // Predicated region
    $region2: #{bidirectional_gru.1} parent=1 // pred_check
      _
    $region3: #{bidirectional_gru.1} parent=1 // pred_check_branch
      %13 = sbr.rel (0) target = $region5
    $region4: #{bidirectional_gru.1} parent=1 // pred_region
      _
    $region5: #{bidirectional_gru.1} parent=1 // pred_fallthru
      _
    // Predicated region
    $region6: #{bidirectional_gru.1} parent=1 // pred_check
      _
    $region7: #{bidirectional_gru.1} parent=1 // pred_check_branch
      %15 = sbr.rel (0) target = $region9
    $region8: #{bidirectional_gru.1} parent=1 // pred_region
      %17 = vsyncadd [#allocation3], 0
      %s18 = sshll.u32 %s1, 4
      %s19 = int_to_ptr.hbm [resolvable:$true] %s18
      %s20 = sshll.u32 [#allocation2], 4
      %s21 = int_to_ptr.vmem [resolvable:$true] %s20
      %26 = dma.hbm_to_vmem [thread:$0]  %s19, 3072, %s21, [#allocation3], 384, 384, 24
    $region9: #{bidirectional_gru.1} parent=1 // pred_fallthru
      _
    // Predicated region
    $region10: #{bidirectional_gru.1} parent=1 // pred_check
      _
    $region11: #{bidirectional_gru.1} parent=1 // pred_check_branch
      %28 = sbr.rel (0) target = $region13
    $region12: #{bidirectional_gru.1} parent=1 // pred_region
      %30 = vsyncadd [#allocation5], 0
      %s31 = sshll.u32 %s2, 4
      %s32 = int_to_ptr.hbm [resolvable:$true] %s31
      %s33 = sshll.u32 [#allocation4], 4
      %s34 = int_to_ptr.vmem [resolvable:$true] %s33
      %39 = dma.hbm_to_vmem [thread:$0]  %s32, 6144, %s34, [#allocation5], 384, 384, 24
    $region13: #{bidirectional_gru.1} parent=1 // pred_fallthru
      _
    // Predicated region
    $region14: #{bidirectional_gru.1} parent=1 // pred_check
      _
    $region15: #{bidirectional_gru.1} parent=1 // pred_check_branch
      %41 = sbr.rel (0) target = $region17
    $region16: #{bidirectional_gru.1} parent=1 // pred_region
      _
    $region17: #{bidirectional_gru.1} parent=1 // pred_fallthru
      _
    // Predicated region
    $region18: #{bidirectional_gru.1} parent=1 // pred_check
      _
    $region19: #{bidirectional_gru.1} parent=1 // pred_check_branch
      %43 = sbr.rel (0) target = $region21
    $region20: #{bidirectional_gru.1} parent=1 // pred_region
      _
    $region21: #{bidirectional_gru.1} parent=1 // pred_fallthru
      _
    // Predicated region
    $region22: #{bidirectional_gru.1} parent=1 // pred_check
      _
    $region23: #{bidirectional_gru.1} parent=1 // pred_check_branch
      %45 = sbr.rel (0) target = $region25
    $region24: #{bidirectional_gru.1} parent=1 // pred_region
      %47 = dma.done [#allocation3], 3072
    $region25: #{bidirectional_gru.1} parent=1 // pred_fallthru
      _
    // Predicated region
    $region26: #{bidirectional_gru.1} parent=1 // pred_check
      _
    $region27: #{bidirectional_gru.1} parent=1 // pred_check_branch
      %49 = sbr.rel (0) target = $region29
    $region28: #{bidirectional_gru.1} parent=1 // pred_region
      %51 = dma.done [#allocation5], 6144
    $region29: #{bidirectional_gru.1} parent=1 // pred_fallthru
      _
    %v52 = vld [vmem:[%s0] sm:$0xff]
    %v53 = vld [vmem:[%s0 + $0x8] sm:$0xff]
    %v54 = vld [vmem:[%s0 + $0x10] sm:$0xff]
    %v55 = vld [vmem:[%s0 + $0x18] sm:$0xff]
    %v56 = vld [vmem:[%s0 + $0x20] sm:$0xff]
    %v57 = vld [vmem:[%s0 + $0x28] sm:$0xff]
    %v58 = vld [vmem:[%s0 + $0x30] sm:$0xff]
    %v59 = vld [vmem:[%s0 + $0x38] sm:$0xff]
    %v60 = vld [vmem:[#allocation2] sm:$0xff]
    %v61 = vld [vmem:[#allocation2 + $0x8] sm:$0xff]
    %v62 = vld [vmem:[#allocation2 + $0x10] sm:$0xff]
    %v63 = vld [vmem:[#allocation2 + $0x18] sm:$0xff]
    %v64 = vld [vmem:[#allocation2 + $0x20] sm:$0xff]
    %v65 = vld [vmem:[#allocation2 + $0x28] sm:$0xff]
    %v66 = vld [vmem:[#allocation2 + $0x30] sm:$0xff]
    %v67 = vld [vmem:[#allocation2 + $0x38] sm:$0xff]
    %v68 = vld [vmem:[#allocation2 + $0x40] sm:$0xff]
    %v69 = vld [vmem:[#allocation2 + $0x48] sm:$0xff]
    %v70 = vld [vmem:[#allocation2 + $0x50] sm:$0xff]
    %v71 = vld [vmem:[#allocation2 + $0x58] sm:$0xff]
    %v72 = vld [vmem:[#allocation2 + $0x60] sm:$0xff]
    %v73 = vld [vmem:[#allocation2 + $0x68] sm:$0xff]
    %v74 = vld [vmem:[#allocation2 + $0x70] sm:$0xff]
    %v75 = vld [vmem:[#allocation2 + $0x78] sm:$0xff]
    %v76 = vld [vmem:[#allocation2 + $0x80] sm:$0xff]
    %v77 = vld [vmem:[#allocation2 + $0x88] sm:$0xff]
    %v78 = vld [vmem:[#allocation2 + $0x90] sm:$0xff]
    %v79 = vld [vmem:[#allocation2 + $0x98] sm:$0xff]
    %v80 = vld [vmem:[#allocation2 + $0xa0] sm:$0xff]
    %v81 = vld [vmem:[#allocation2 + $0xa8] sm:$0xff]
    %v82 = vld [vmem:[#allocation2 + $0xb0] sm:$0xff]
    %v83 = vld [vmem:[#allocation2 + $0xb8] sm:$0xff]
    %v84 = vld [vmem:[%s3] sm:$0x7]
    %v86 = vperm.slane %v84, 0
    %v87 = vperm.slane %v84, 1
    %v88 = vperm.slane %v84, 2
    %vm92 = vcmask 523264
    %v94 = vsel %vm92, %v52, 0
    %v97 = vsel %vm92, %v53, 0
    %v100 = vsel %vm92, %v54, 0
    %v103 = vsel %vm92, %v55, 0
    %v106 = vsel %vm92, %v56, 0
    %v109 = vsel %vm92, %v57, 0
    %v112 = vsel %vm92, %v58, 0
    %v115 = vsel %vm92, %v59, 0
    %117 = vmatpush.msra.mxu0 0.0
    %118 = vmatpush.msra.mxu0 0.0
    %119 = vmatpush.msra.mxu0 0.0
    %120 = vmatpush.msra.mxu0 0.0
    %121 = vmatpush.msra.mxu0 0.0
    %122 = vmatpush.msra.mxu0 0.0
    %123 = vmatpush.msra.mxu0 0.0
    %124 = vmatpush.msra.mxu0 0.0
    %125 = vmatpush.msra.mxu0 %v81
    %126 = vmatpush.msra.mxu0 %v78
    %127 = vmatpush.msra.mxu0 %v75
    %128 = vmatpush.msra.mxu0 %v72
    %129 = vmatpush.msra.mxu0 %v69
    %130 = vmatpush.msra.mxu0 %v66
    %131 = vmatpush.msra.mxu0 %v63
    %132 = vmatpush.msra.mxu0 %v60
    %133 = vmatmul.f32.gmra.mxu0 %v94
    %v134 = vpop.f32.mrf.mxu0
    %v135 = vadd.f32 %v86, %v134
    %136 = vmatmul.f32.gmra.mxu0 %v97
    %v137 = vpop.f32.mrf.mxu0
    %v138 = vadd.f32 %v86, %v137
    %139 = vmatmul.f32.gmra.mxu0 %v100
    %v140 = vpop.f32.mrf.mxu0
    %v141 = vadd.f32 %v86, %v140
    %142 = vmatmul.f32.gmra.mxu0 %v103
    %v143 = vpop.f32.mrf.mxu0
    %v144 = vadd.f32 %v86, %v143
    %145 = vmatmul.f32.gmra.mxu0 %v106
    %v146 = vpop.f32.mrf.mxu0
    %v147 = vadd.f32 %v86, %v146
    %148 = vmatmul.f32.gmra.mxu0 %v109
    %v149 = vpop.f32.mrf.mxu0
    %v150 = vadd.f32 %v86, %v149
    %151 = vmatmul.f32.gmra.mxu0 %v112
    %v152 = vpop.f32.mrf.mxu0
    %v153 = vadd.f32 %v86, %v152
    %154 = vmatmul.f32.gmra.mxu0 %v115
    %v155 = vpop.f32.mrf.mxu0
    %v156 = vadd.f32 %v86, %v155
    %157 = vdwg.mxu0
    %158 = vmatpush.msra.mxu0 0.0
    %159 = vmatpush.msra.mxu0 0.0
    %160 = vmatpush.msra.mxu0 0.0
    %161 = vmatpush.msra.mxu0 0.0
    %162 = vmatpush.msra.mxu0 0.0
    %163 = vmatpush.msra.mxu0 0.0
    %164 = vmatpush.msra.mxu0 0.0
    %165 = vmatpush.msra.mxu0 0.0
    %166 = vmatpush.msra.mxu0 %v82
    %167 = vmatpush.msra.mxu0 %v79
    %168 = vmatpush.msra.mxu0 %v76
    %169 = vmatpush.msra.mxu0 %v73
    %170 = vmatpush.msra.mxu0 %v70
    %171 = vmatpush.msra.mxu0 %v67
    %172 = vmatpush.msra.mxu0 %v64
    %173 = vmatpush.msra.mxu0 %v61
    %174 = vmatmul.f32.gmra.mxu0 %v94
    %v175 = vpop.f32.mrf.mxu0
    %v176 = vadd.f32 %v87, %v175
    %177 = vmatmul.f32.gmra.mxu0 %v97
    %v178 = vpop.f32.mrf.mxu0
    %v179 = vadd.f32 %v87, %v178
    %180 = vmatmul.f32.gmra.mxu0 %v100
    %v181 = vpop.f32.mrf.mxu0
    %v182 = vadd.f32 %v87, %v181
    %183 = vmatmul.f32.gmra.mxu0 %v103
    %v184 = vpop.f32.mrf.mxu0
    %v185 = vadd.f32 %v87, %v184
    %186 = vmatmul.f32.gmra.mxu0 %v106
    %v187 = vpop.f32.mrf.mxu0
    %v188 = vadd.f32 %v87, %v187
    %189 = vmatmul.f32.gmra.mxu0 %v109
    %v190 = vpop.f32.mrf.mxu0
    %v191 = vadd.f32 %v87, %v190
    %192 = vmatmul.f32.gmra.mxu0 %v112
    %v193 = vpop.f32.mrf.mxu0
    %v194 = vadd.f32 %v87, %v193
    %195 = vmatmul.f32.gmra.mxu0 %v115
    %v196 = vpop.f32.mrf.mxu0
    %v197 = vadd.f32 %v87, %v196
    %198 = vdwg.mxu0
    %199 = vmatpush.msra.mxu0 0.0
    %200 = vmatpush.msra.mxu0 0.0
    %201 = vmatpush.msra.mxu0 0.0
    %202 = vmatpush.msra.mxu0 0.0
    %203 = vmatpush.msra.mxu0 0.0
    %204 = vmatpush.msra.mxu0 0.0
    %205 = vmatpush.msra.mxu0 0.0
    %206 = vmatpush.msra.mxu0 0.0
    %207 = vmatpush.msra.mxu0 %v83
    %208 = vmatpush.msra.mxu0 %v80
    %209 = vmatpush.msra.mxu0 %v77
    %210 = vmatpush.msra.mxu0 %v74
    %211 = vmatpush.msra.mxu0 %v71
    %212 = vmatpush.msra.mxu0 %v68
    %213 = vmatpush.msra.mxu0 %v65
    %214 = vmatpush.msra.mxu0 %v62
    %215 = vmatmul.f32.gmra.mxu0 %v94
    %v216 = vpop.f32.mrf.mxu0
    %v217 = vadd.f32 %v88, %v216
    %218 = vmatmul.f32.gmra.mxu0 %v97
    %v219 = vpop.f32.mrf.mxu0
    %v220 = vadd.f32 %v88, %v219
    %221 = vmatmul.f32.gmra.mxu0 %v100
    %v222 = vpop.f32.mrf.mxu0
    %v223 = vadd.f32 %v88, %v222
    %224 = vmatmul.f32.gmra.mxu0 %v103
    %v225 = vpop.f32.mrf.mxu0
    %v226 = vadd.f32 %v88, %v225
    %227 = vmatmul.f32.gmra.mxu0 %v106
    %v228 = vpop.f32.mrf.mxu0
    %v229 = vadd.f32 %v88, %v228
    %230 = vmatmul.f32.gmra.mxu0 %v109
    %v231 = vpop.f32.mrf.mxu0
    %v232 = vadd.f32 %v88, %v231
    %233 = vmatmul.f32.gmra.mxu0 %v112
    %v234 = vpop.f32.mrf.mxu0
    %v235 = vadd.f32 %v88, %v234
    %236 = vmatmul.f32.gmra.mxu0 %v115
    %v237 = vpop.f32.mrf.mxu0
    %v238 = vadd.f32 %v88, %v237
    %239 = vdwg.mxu0
    %v240 = vld [vmem:[%s4] sm:$0x1]
    %v242 = vperm.slane %v240, 0
    %v244 = vld [vmem:[#allocation4] sm:$0xff]
    %v245 = vld [vmem:[#allocation4 + $0x8] sm:$0xff]
    %v246 = vld [vmem:[#allocation4 + $0x10] sm:$0xff]
    %v247 = vld [vmem:[#allocation4 + $0x18] sm:$0xff]
    %v248 = vld [vmem:[#allocation4 + $0x20] sm:$0xff]
    %v249 = vld [vmem:[#allocation4 + $0x28] sm:$0xff]
    %v250 = vld [vmem:[#allocation4 + $0x30] sm:$0xff]
    %v251 = vld [vmem:[#allocation4 + $0x38] sm:$0xff]
    %v252 = vld [vmem:[#allocation4 + $0x40] sm:$0xff]
    %v253 = vld [vmem:[#allocation4 + $0x48] sm:$0xff]
    %v254 = vld [vmem:[#allocation4 + $0x50] sm:$0xff]
    %v255 = vld [vmem:[#allocation4 + $0x58] sm:$0xff]
    %v256 = vld [vmem:[#allocation4 + $0x60] sm:$0xff]
    %v257 = vld [vmem:[#allocation4 + $0x68] sm:$0xff]
    %v258 = vld [vmem:[#allocation4 + $0x70] sm:$0xff]
    %v259 = vld [vmem:[#allocation4 + $0x78] sm:$0xff]
    %v260 = vld [vmem:[#allocation4 + $0x80] sm:$0xff]
    %v261 = vld [vmem:[#allocation4 + $0x88] sm:$0xff]
    %v262 = vld [vmem:[#allocation4 + $0x90] sm:$0xff]
    %v263 = vld [vmem:[#allocation4 + $0x98] sm:$0xff]
    %v264 = vld [vmem:[#allocation4 + $0xa0] sm:$0xff]
    %v265 = vld [vmem:[#allocation4 + $0xa8] sm:$0xff]
    %v266 = vld [vmem:[#allocation4 + $0xb0] sm:$0xff]
    %v267 = vld [vmem:[#allocation4 + $0xb8] sm:$0xff]
    %v268 = vld [vmem:[#allocation4 + $0xc0] sm:$0xff]
    %v269 = vld [vmem:[#allocation4 + $0xc8] sm:$0xff]
    %v270 = vld [vmem:[#allocation4 + $0xd0] sm:$0xff]
    %v271 = vld [vmem:[#allocation4 + $0xd8] sm:$0xff]
    %v272 = vld [vmem:[#allocation4 + $0xe0] sm:$0xff]
    %v273 = vld [vmem:[#allocation4 + $0xe8] sm:$0xff]
    %v274 = vld [vmem:[#allocation4 + $0xf0] sm:$0xff]
    %v275 = vld [vmem:[#allocation4 + $0xf8] sm:$0xff]
    %v276 = vld [vmem:[#allocation4 + $0x100] sm:$0xff]
    %v277 = vld [vmem:[#allocation4 + $0x108] sm:$0xff]
    %v278 = vld [vmem:[#allocation4 + $0x110] sm:$0xff]
    %v279 = vld [vmem:[#allocation4 + $0x118] sm:$0xff]
    %v280 = vld [vmem:[#allocation4 + $0x120] sm:$0xff]
    %v281 = vld [vmem:[#allocation4 + $0x128] sm:$0xff]
    %v282 = vld [vmem:[#allocation4 + $0x130] sm:$0xff]
    %v283 = vld [vmem:[#allocation4 + $0x138] sm:$0xff]
    %v284 = vld [vmem:[#allocation4 + $0x140] sm:$0xff]
    %v285 = vld [vmem:[#allocation4 + $0x148] sm:$0xff]
    %v286 = vld [vmem:[#allocation4 + $0x150] sm:$0xff]
    %v287 = vld [vmem:[#allocation4 + $0x158] sm:$0xff]
    %v288 = vld [vmem:[#allocation4 + $0x160] sm:$0xff]
    %v289 = vld [vmem:[#allocation4 + $0x168] sm:$0xff]
    %v290 = vld [vmem:[#allocation4 + $0x170] sm:$0xff]
    %v291 = vld [vmem:[#allocation4 + $0x178] sm:$0xff]
    %292 = vmatpush.msra.mxu0 %v289
    %293 = vmatpush.msra.mxu0 %v286
    %294 = vmatpush.msra.mxu0 %v283
    %295 = vmatpush.msra.mxu0 %v280
    %296 = vmatpush.msra.mxu0 %v277
    %297 = vmatpush.msra.mxu0 %v274
    %298 = vmatpush.msra.mxu0 %v271
    %299 = vmatpush.msra.mxu0 %v268
    %300 = vmatpush.msra.mxu0 %v265
    %301 = vmatpush.msra.mxu0 %v262
    %302 = vmatpush.msra.mxu0 %v259
    %303 = vmatpush.msra.mxu0 %v256
    %304 = vmatpush.msra.mxu0 %v253
    %305 = vmatpush.msra.mxu0 %v250
    %306 = vmatpush.msra.mxu0 %v247
    %307 = vmatpush.msra.mxu0 %v244
    %308 = vmatmul.f32.gmra.mxu0 0.0
    %v309 = vpop.f32.mrf.mxu0
    %v310 = vadd.f32 0.0, %v309
    %311 = vdwg.mxu0
    %312 = vmatpush.msra.mxu0 %v290
    %313 = vmatpush.msra.mxu0 %v287
    %314 = vmatpush.msra.mxu0 %v284
    %315 = vmatpush.msra.mxu0 %v281
    %316 = vmatpush.msra.mxu0 %v278
    %317 = vmatpush.msra.mxu0 %v275
    %318 = vmatpush.msra.mxu0 %v272
    %319 = vmatpush.msra.mxu0 %v269
    %320 = vmatpush.msra.mxu0 %v266
    %321 = vmatpush.msra.mxu0 %v263
    %322 = vmatpush.msra.mxu0 %v260
    %323 = vmatpush.msra.mxu0 %v257
    %324 = vmatpush.msra.mxu0 %v254
    %325 = vmatpush.msra.mxu0 %v251
    %326 = vmatpush.msra.mxu0 %v248
    %327 = vmatpush.msra.mxu0 %v245
    %328 = vmatmul.f32.gmra.mxu0 0.0
    %v329 = vpop.f32.mrf.mxu0
    %v330 = vadd.f32 0.0, %v329
    %331 = vdwg.mxu0
    %332 = vmatpush.msra.mxu0 %v291
    %333 = vmatpush.msra.mxu0 %v288
    %334 = vmatpush.msra.mxu0 %v285
    %335 = vmatpush.msra.mxu0 %v282
    %336 = vmatpush.msra.mxu0 %v279
    %337 = vmatpush.msra.mxu0 %v276
    %338 = vmatpush.msra.mxu0 %v273
    %339 = vmatpush.msra.mxu0 %v270
    %340 = vmatpush.msra.mxu0 %v267
    %341 = vmatpush.msra.mxu0 %v264
    %342 = vmatpush.msra.mxu0 %v261
    %343 = vmatpush.msra.mxu0 %v258
    %344 = vmatpush.msra.mxu0 %v255
    %345 = vmatpush.msra.mxu0 %v252
    %346 = vmatpush.msra.mxu0 %v249
    %347 = vmatpush.msra.mxu0 %v246
    %348 = vmatmul.f32.gmra.mxu0 0.0
    %v349 = vpop.f32.mrf.mxu0
    %v350 = vadd.f32 0.0, %v349
    %351 = vdwg.mxu0
    %v352 = vadd.f32 %v135, %v310
    %v353 = vxor.u32 %v352, 2147483648
    %v354 = vmul.f32 %v353, 1.442695
    %v355 = vpow.pop %v354
    %v356 = vadd.f32 %v355, 1.0
    %v357 = vrcp.pop %v356
    %v358 = vmul.f32 %v356, %v357
    %v359 = vsub.f32 1.0, %v358
    %v360 = vmul.f32 %v357, %v359
    %v361 = vadd.f32 %v357, %v360
    %vm362 = vweird.f32 %v356
    %vm363 = vweird.f32 %v357
    %vm364 = vmor %vm362, %vm363
    %v365 = vsel %vm364, %v357, %v361
    %v366 = vand.u32 2147483647, %v356
    %vm367 = vcmp.eq.f32.partialorder %v366, 8.507059e+37
    %v368 = vand.u32 %v356, 2147483648
    %v369 = vor.u32 1.1754944e-38, %v368
    %v370 = vsel %vm367, %v369, %v365
    %v371 = vmul.f32 1.0, %v370
    %v372 = vadd.f32 %v176, %v330
    %v373 = vxor.u32 %v372, 2147483648
    %v374 = vmul.f32 %v373, 1.442695
    %v375 = vpow.pop %v374
    %v376 = vadd.f32 %v375, 1.0
    %v377 = vrcp.pop %v376
    %v378 = vmul.f32 %v376, %v377
    %v379 = vsub.f32 1.0, %v378
    %v380 = vmul.f32 %v377, %v379
    %v381 = vadd.f32 %v377, %v380
    %vm382 = vweird.f32 %v376
    %vm383 = vweird.f32 %v377
    %vm384 = vmor %vm382, %vm383
    %v385 = vsel %vm384, %v377, %v381
    %v386 = vand.u32 2147483647, %v376
    %vm387 = vcmp.eq.f32.partialorder %v386, 8.507059e+37
    %v388 = vand.u32 %v376, 2147483648
    %v389 = vor.u32 1.1754944e-38, %v388
    %v390 = vsel %vm387, %v389, %v385
    %v391 = vmul.f32 1.0, %v390
    %v392 = vadd.f32 %v350, %v242
    %v393 = vmul.f32 %v371, %v392
    %v394 = vadd.f32 %v217, %v393
    %v395 = vtanh.pop %v394
    %v396 = vsub.f32 0.0, %v395
    %v397 = vmul.f32 %v391, %v396
    %v398 = vadd.f32 %v395, %v397
    %399 = vst [vmem:[%s5] sm:$0xff] %v398
    %400 = vmatpush.msra.mxu0 %v289
    %401 = vmatpush.msra.mxu0 %v286
    %402 = vmatpush.msra.mxu0 %v283
    %403 = vmatpush.msra.mxu0 %v280
    %404 = vmatpush.msra.mxu0 %v277
    %405 = vmatpush.msra.mxu0 %v274
    %406 = vmatpush.msra.mxu0 %v271
    %407 = vmatpush.msra.mxu0 %v268
    %408 = vmatpush.msra.mxu0 %v265
    %409 = vmatpush.msra.mxu0 %v262
    %410 = vmatpush.msra.mxu0 %v259
    %411 = vmatpush.msra.mxu0 %v256
    %412 = vmatpush.msra.mxu0 %v253
    %413 = vmatpush.msra.mxu0 %v250
    %414 = vmatpush.msra.mxu0 %v247
    %415 = vmatpush.msra.mxu0 %v244
    %416 = vmatmul.f32.gmra.mxu0 %v398
    %v417 = vpop.f32.mrf.mxu0
    %v418 = vadd.f32 0.0, %v417
    %419 = vdwg.mxu0
    %420 = vmatpush.msra.mxu0 %v290
    %421 = vmatpush.msra.mxu0 %v287
    %422 = vmatpush.msra.mxu0 %v284
    %423 = vmatpush.msra.mxu0 %v281
    %424 = vmatpush.msra.mxu0 %v278
    %425 = vmatpush.msra.mxu0 %v275
    %426 = vmatpush.msra.mxu0 %v272
    %427 = vmatpush.msra.mxu0 %v269
    %428 = vmatpush.msra.mxu0 %v266
    %429 = vmatpush.msra.mxu0 %v263
    %430 = vmatpush.msra.mxu0 %v260
    %431 = vmatpush.msra.mxu0 %v257
    %432 = vmatpush.msra.mxu0 %v254
    %433 = vmatpush.msra.mxu0 %v251
    %434 = vmatpush.msra.mxu0 %v248
    %435 = vmatpush.msra.mxu0 %v245
    %436 = vmatmul.f32.gmra.mxu0 %v398
    %v437 = vpop.f32.mrf.mxu0
    %v438 = vadd.f32 0.0, %v437
    %439 = vdwg.mxu0
    %440 = vmatpush.msra.mxu0 %v291
    %441 = vmatpush.msra.mxu0 %v288
    %442 = vmatpush.msra.mxu0 %v285
    %443 = vmatpush.msra.mxu0 %v282
    %444 = vmatpush.msra.mxu0 %v279
    %445 = vmatpush.msra.mxu0 %v276
    %446 = vmatpush.msra.mxu0 %v273
    %447 = vmatpush.msra.mxu0 %v270
    %448 = vmatpush.msra.mxu0 %v267
    %449 = vmatpush.msra.mxu0 %v264
    %450 = vmatpush.msra.mxu0 %v261
    %451 = vmatpush.msra.mxu0 %v258
    %452 = vmatpush.msra.mxu0 %v255
    %453 = vmatpush.msra.mxu0 %v252
    %454 = vmatpush.msra.mxu0 %v249
    %455 = vmatpush.msra.mxu0 %v246
    %456 = vmatmul.f32.gmra.mxu0 %v398
    %v457 = vpop.f32.mrf.mxu0
    %v458 = vadd.f32 0.0, %v457
    %459 = vdwg.mxu0
    %v460 = vadd.f32 %v138, %v418
    %v461 = vxor.u32 %v460, 2147483648
    %v462 = vmul.f32 %v461, 1.442695
    %v463 = vpow.pop %v462
    %v464 = vadd.f32 %v463, 1.0
    %v465 = vrcp.pop %v464
    %v466 = vmul.f32 %v464, %v465
    %v467 = vsub.f32 1.0, %v466
    %v468 = vmul.f32 %v465, %v467
    %v469 = vadd.f32 %v465, %v468
    %vm470 = vweird.f32 %v464
    %vm471 = vweird.f32 %v465
    %vm472 = vmor %vm470, %vm471
    %v473 = vsel %vm472, %v465, %v469
    %v474 = vand.u32 2147483647, %v464
    %vm475 = vcmp.eq.f32.partialorder %v474, 8.507059e+37
    %v476 = vand.u32 %v464, 2147483648
    %v477 = vor.u32 1.1754944e-38, %v476
    %v478 = vsel %vm475, %v477, %v473
    %v479 = vmul.f32 1.0, %v478
    %v480 = vadd.f32 %v179, %v438
    %v481 = vxor.u32 %v480, 2147483648
    %v482 = vmul.f32 %v481, 1.442695
    %v483 = vpow.pop %v482
    %v484 = vadd.f32 %v483, 1.0
    %v485 = vrcp.pop %v484
    %v486 = vmul.f32 %v484, %v485
    %v487 = vsub.f32 1.0, %v486
    %v488 = vmul.f32 %v485, %v487
    %v489 = vadd.f32 %v485, %v488
    %vm490 = vweird.f32 %v484
    %vm491 = vweird.f32 %v485
    %vm492 = vmor %vm490, %vm491
    %v493 = vsel %vm492, %v485, %v489
    %v494 = vand.u32 2147483647, %v484
    %vm495 = vcmp.eq.f32.partialorder %v494, 8.507059e+37
    %v496 = vand.u32 %v484, 2147483648
    %v497 = vor.u32 1.1754944e-38, %v496
    %v498 = vsel %vm495, %v497, %v493
    %v499 = vmul.f32 1.0, %v498
    %v500 = vadd.f32 %v458, %v242
    %v501 = vmul.f32 %v479, %v500
    %v502 = vadd.f32 %v220, %v501
    %v503 = vtanh.pop %v502
    %v504 = vsub.f32 %v398, %v503
    %v505 = vmul.f32 %v499, %v504
    %v506 = vadd.f32 %v503, %v505
    %s507 = scalar_lea.vmem %s5, 8
    %508 = vst [vmem:[%s507] sm:$0xff] %v506
    %509 = vmatpush.msra.mxu0 %v289
    %510 = vmatpush.msra.mxu0 %v286
    %511 = vmatpush.msra.mxu0 %v283
    %512 = vmatpush.msra.mxu0 %v280
    %513 = vmatpush.msra.mxu0 %v277
    %514 = vmatpush.msra.mxu0 %v274
    %515 = vmatpush.msra.mxu0 %v271
    %516 = vmatpush.msra.mxu0 %v268
    %517 = vmatpush.msra.mxu0 %v265
    %518 = vmatpush.msra.mxu0 %v262
    %519 = vmatpush.msra.mxu0 %v259
    %520 = vmatpush.msra.mxu0 %v256
    %521 = vmatpush.msra.mxu0 %v253
    %522 = vmatpush.msra.mxu0 %v250
    %523 = vmatpush.msra.mxu0 %v247
    %524 = vmatpush.msra.mxu0 %v244
    %525 = vmatmul.f32.gmra.mxu0 %v506
    %v526 = vpop.f32.mrf.mxu0
    %v527 = vadd.f32 0.0, %v526
    %528 = vdwg.mxu0
    %529 = vmatpush.msra.mxu0 %v290
    %530 = vmatpush.msra.mxu0 %v287
    %531 = vmatpush.msra.mxu0 %v284
    %532 = vmatpush.msra.mxu0 %v281
    %533 = vmatpush.msra.mxu0 %v278
    %534 = vmatpush.msra.mxu0 %v275
    %535 = vmatpush.msra.mxu0 %v272
    %536 = vmatpush.msra.mxu0 %v269
    %537 = vmatpush.msra.mxu0 %v266
    %538 = vmatpush.msra.mxu0 %v263
    %539 = vmatpush.msra.mxu0 %v260
    %540 = vmatpush.msra.mxu0 %v257
    %541 = vmatpush.msra.mxu0 %v254
    %542 = vmatpush.msra.mxu0 %v251
    %543 = vmatpush.msra.mxu0 %v248
    %544 = vmatpush.msra.mxu0 %v245
    %545 = vmatmul.f32.gmra.mxu0 %v506
    %v546 = vpop.f32.mrf.mxu0
    %v547 = vadd.f32 0.0, %v546
    %548 = vdwg.mxu0
    %549 = vmatpush.msra.mxu0 %v291
    %550 = vmatpush.msra.mxu0 %v288
    %551 = vmatpush.msra.mxu0 %v285
    %552 = vmatpush.msra.mxu0 %v282
    %553 = vmatpush.msra.mxu0 %v279
    %554 = vmatpush.msra.mxu0 %v276
    %555 = vmatpush.msra.mxu0 %v273
    %556 = vmatpush.msra.mxu0 %v270
    %557 = vmatpush.msra.mxu0 %v267
    %558 = vmatpush.msra.mxu0 %v264
    %559 = vmatpush.msra.mxu0 %v261
    %560 = vmatpush.msra.mxu0 %v258
    %561 = vmatpush.msra.mxu0 %v255
    %562 = vmatpush.msra.mxu0 %v252
    %563 = vmatpush.msra.mxu0 %v249
    %564 = vmatpush.msra.mxu0 %v246
    %565 = vmatmul.f32.gmra.mxu0 %v506
    %v566 = vpop.f32.mrf.mxu0
    %v567 = vadd.f32 0.0, %v566
    %568 = vdwg.mxu0
    %v569 = vadd.f32 %v141, %v527
    %v570 = vxor.u32 %v569, 2147483648
    %v571 = vmul.f32 %v570, 1.442695
    %v572 = vpow.pop %v571
    %v573 = vadd.f32 %v572, 1.0
    %v574 = vrcp.pop %v573
    %v575 = vmul.f32 %v573, %v574
    %v576 = vsub.f32 1.0, %v575
    %v577 = vmul.f32 %v574, %v576
    %v578 = vadd.f32 %v574, %v577
    %vm579 = vweird.f32 %v573
    %vm580 = vweird.f32 %v574
    %vm581 = vmor %vm579, %vm580
    %v582 = vsel %vm581, %v574, %v578
    %v583 = vand.u32 2147483647, %v573
    %vm584 = vcmp.eq.f32.partialorder %v583, 8.507059e+37
    %v585 = vand.u32 %v573, 2147483648
    %v586 = vor.u32 1.1754944e-38, %v585
    %v587 = vsel %vm584, %v586, %v582
    %v588 = vmul.f32 1.0, %v587
    %v589 = vadd.f32 %v182, %v547
    %v590 = vxor.u32 %v589, 2147483648
    %v591 = vmul.f32 %v590, 1.442695
    %v592 = vpow.pop %v591
    %v593 = vadd.f32 %v592, 1.0
    %v594 = vrcp.pop %v593
    %v595 = vmul.f32 %v593, %v594
    %v596 = vsub.f32 1.0, %v595
    %v597 = vmul.f32 %v594, %v596
    %v598 = vadd.f32 %v594, %v597
    %vm599 = vweird.f32 %v593
    %vm600 = vweird.f32 %v594
    %vm601 = vmor %vm599, %vm600
    %v602 = vsel %vm601, %v594, %v598
    %v603 = vand.u32 2147483647, %v593
    %vm604 = vcmp.eq.f32.partialorder %v603, 8.507059e+37
    %v605 = vand.u32 %v593, 2147483648
    %v606 = vor.u32 1.1754944e-38, %v605
    %v607 = vsel %vm604, %v606, %v602
    %v608 = vmul.f32 1.0, %v607
    %v609 = vadd.f32 %v567, %v242
    %v610 = vmul.f32 %v588, %v609
    %v611 = vadd.f32 %v223, %v610
    %v612 = vtanh.pop %v611
    %v613 = vsub.f32 %v506, %v612
    %v614 = vmul.f32 %v608, %v613
    %v615 = vadd.f32 %v612, %v614
    %s616 = scalar_lea.vmem %s5, 16
    %617 = vst [vmem:[%s616] sm:$0xff] %v615
    %618 = vmatpush.msra.mxu0 %v289
    %619 = vmatpush.msra.mxu0 %v286
    %620 = vmatpush.msra.mxu0 %v283
    %621 = vmatpush.msra.mxu0 %v280
    %622 = vmatpush.msra.mxu0 %v277
    %623 = vmatpush.msra.mxu0 %v274
    %624 = vmatpush.msra.mxu0 %v271
    %625 = vmatpush.msra.mxu0 %v268
    %626 = vmatpush.msra.mxu0 %v265
    %627 = vmatpush.msra.mxu0 %v262
    %628 = vmatpush.msra.mxu0 %v259
    %629 = vmatpush.msra.mxu0 %v256
    %630 = vmatpush.msra.mxu0 %v253
    %631 = vmatpush.msra.mxu0 %v250
    %632 = vmatpush.msra.mxu0 %v247
    %633 = vmatpush.msra.mxu0 %v244
    %634 = vmatmul.f32.gmra.mxu0 %v615
    %v635 = vpop.f32.mrf.mxu0
    %v636 = vadd.f32 0.0, %v635
    %637 = vdwg.mxu0
    %638 = vmatpush.msra.mxu0 %v290
    %639 = vmatpush.msra.mxu0 %v287
    %640 = vmatpush.msra.mxu0 %v284
    %641 = vmatpush.msra.mxu0 %v281
    %642 = vmatpush.msra.mxu0 %v278
    %643 = vmatpush.msra.mxu0 %v275
    %644 = vmatpush.msra.mxu0 %v272
    %645 = vmatpush.msra.mxu0 %v269
    %646 = vmatpush.msra.mxu0 %v266
    %647 = vmatpush.msra.mxu0 %v263
    %648 = vmatpush.msra.mxu0 %v260
    %649 = vmatpush.msra.mxu0 %v257
    %650 = vmatpush.msra.mxu0 %v254
    %651 = vmatpush.msra.mxu0 %v251
    %652 = vmatpush.msra.mxu0 %v248
    %653 = vmatpush.msra.mxu0 %v245
    %654 = vmatmul.f32.gmra.mxu0 %v615
    %v655 = vpop.f32.mrf.mxu0
    %v656 = vadd.f32 0.0, %v655
    %657 = vdwg.mxu0
    %658 = vmatpush.msra.mxu0 %v291
    %659 = vmatpush.msra.mxu0 %v288
    %660 = vmatpush.msra.mxu0 %v285
    %661 = vmatpush.msra.mxu0 %v282
    %662 = vmatpush.msra.mxu0 %v279
    %663 = vmatpush.msra.mxu0 %v276
    %664 = vmatpush.msra.mxu0 %v273
    %665 = vmatpush.msra.mxu0 %v270
    %666 = vmatpush.msra.mxu0 %v267
    %667 = vmatpush.msra.mxu0 %v264
    %668 = vmatpush.msra.mxu0 %v261
    %669 = vmatpush.msra.mxu0 %v258
    %670 = vmatpush.msra.mxu0 %v255
    %671 = vmatpush.msra.mxu0 %v252
    %672 = vmatpush.msra.mxu0 %v249
    %673 = vmatpush.msra.mxu0 %v246
    %674 = vmatmul.f32.gmra.mxu0 %v615
    %v675 = vpop.f32.mrf.mxu0
    %v676 = vadd.f32 0.0, %v675
    %677 = vdwg.mxu0
    %v678 = vadd.f32 %v144, %v636
    %v679 = vxor.u32 %v678, 2147483648
    %v680 = vmul.f32 %v679, 1.442695
    %v681 = vpow.pop %v680
    %v682 = vadd.f32 %v681, 1.0
    %v683 = vrcp.pop %v682
    %v684 = vmul.f32 %v682, %v683
    %v685 = vsub.f32 1.0, %v684
    %v686 = vmul.f32 %v683, %v685
    %v687 = vadd.f32 %v683, %v686
    %vm688 = vweird.f32 %v682
    %vm689 = vweird.f32 %v683
    %vm690 = vmor %vm688, %vm689
    %v691 = vsel %vm690, %v683, %v687
    %v692 = vand.u32 2147483647, %v682
    %vm693 = vcmp.eq.f32.partialorder %v692, 8.507059e+37
    %v694 = vand.u32 %v682, 2147483648
    %v695 = vor.u32 1.1754944e-38, %v694
    %v696 = vsel %vm693, %v695, %v691
    %v697 = vmul.f32 1.0, %v696
    %v698 = vadd.f32 %v185, %v656
    %v699 = vxor.u32 %v698, 2147483648
    %v700 = vmul.f32 %v699, 1.442695
    %v701 = vpow.pop %v700
    %v702 = vadd.f32 %v701, 1.0
    %v703 = vrcp.pop %v702
    %v704 = vmul.f32 %v702, %v703
    %v705 = vsub.f32 1.0, %v704
    %v706 = vmul.f32 %v703, %v705
    %v707 = vadd.f32 %v703, %v706
    %vm708 = vweird.f32 %v702
    %vm709 = vweird.f32 %v703
    %vm710 = vmor %vm708, %vm709
    %v711 = vsel %vm710, %v703, %v707
    %v712 = vand.u32 2147483647, %v702
    %vm713 = vcmp.eq.f32.partialorder %v712, 8.507059e+37
    %v714 = vand.u32 %v702, 2147483648
    %v715 = vor.u32 1.1754944e-38, %v714
    %v716 = vsel %vm713, %v715, %v711
    %v717 = vmul.f32 1.0, %v716
    %v718 = vadd.f32 %v676, %v242
    %v719 = vmul.f32 %v697, %v718
    %v720 = vadd.f32 %v226, %v719
    %v721 = vtanh.pop %v720
    %v722 = vsub.f32 %v615, %v721
    %v723 = vmul.f32 %v717, %v722
    %v724 = vadd.f32 %v721, %v723
    %s725 = scalar_lea.vmem %s5, 24
    %726 = vst [vmem:[%s725] sm:$0xff] %v724
    %727 = vmatpush.msra.mxu0 %v289
    %728 = vmatpush.msra.mxu0 %v286
    %729 = vmatpush.msra.mxu0 %v283
    %730 = vmatpush.msra.mxu0 %v280
    %731 = vmatpush.msra.mxu0 %v277
    %732 = vmatpush.msra.mxu0 %v274
    %733 = vmatpush.msra.mxu0 %v271
    %734 = vmatpush.msra.mxu0 %v268
    %735 = vmatpush.msra.mxu0 %v265
    %736 = vmatpush.msra.mxu0 %v262
    %737 = vmatpush.msra.mxu0 %v259
    %738 = vmatpush.msra.mxu0 %v256
    %739 = vmatpush.msra.mxu0 %v253
    %740 = vmatpush.msra.mxu0 %v250
    %741 = vmatpush.msra.mxu0 %v247
    %742 = vmatpush.msra.mxu0 %v244
    %743 = vmatmul.f32.gmra.mxu0 %v724
    %v744 = vpop.f32.mrf.mxu0
    %v745 = vadd.f32 0.0, %v744
    %746 = vdwg.mxu0
    %747 = vmatpush.msra.mxu0 %v290
    %748 = vmatpush.msra.mxu0 %v287
    %749 = vmatpush.msra.mxu0 %v284
    %750 = vmatpush.msra.mxu0 %v281
    %751 = vmatpush.msra.mxu0 %v278
    %752 = vmatpush.msra.mxu0 %v275
    %753 = vmatpush.msra.mxu0 %v272
    %754 = vmatpush.msra.mxu0 %v269
    %755 = vmatpush.msra.mxu0 %v266
    %756 = vmatpush.msra.mxu0 %v263
    %757 = vmatpush.msra.mxu0 %v260
    %758 = vmatpush.msra.mxu0 %v257
    %759 = vmatpush.msra.mxu0 %v254
    %760 = vmatpush.msra.mxu0 %v251
    %761 = vmatpush.msra.mxu0 %v248
    %762 = vmatpush.msra.mxu0 %v245
    %763 = vmatmul.f32.gmra.mxu0 %v724
    %v764 = vpop.f32.mrf.mxu0
    %v765 = vadd.f32 0.0, %v764
    %766 = vdwg.mxu0
    %767 = vmatpush.msra.mxu0 %v291
    %768 = vmatpush.msra.mxu0 %v288
    %769 = vmatpush.msra.mxu0 %v285
    %770 = vmatpush.msra.mxu0 %v282
    %771 = vmatpush.msra.mxu0 %v279
    %772 = vmatpush.msra.mxu0 %v276
    %773 = vmatpush.msra.mxu0 %v273
    %774 = vmatpush.msra.mxu0 %v270
    %775 = vmatpush.msra.mxu0 %v267
    %776 = vmatpush.msra.mxu0 %v264
    %777 = vmatpush.msra.mxu0 %v261
    %778 = vmatpush.msra.mxu0 %v258
    %779 = vmatpush.msra.mxu0 %v255
    %780 = vmatpush.msra.mxu0 %v252
    %781 = vmatpush.msra.mxu0 %v249
    %782 = vmatpush.msra.mxu0 %v246
    %783 = vmatmul.f32.gmra.mxu0 %v724
    %v784 = vpop.f32.mrf.mxu0
    %v785 = vadd.f32 0.0, %v784
    %786 = vdwg.mxu0
    %v787 = vadd.f32 %v147, %v745
    %v788 = vxor.u32 %v787, 2147483648
    %v789 = vmul.f32 %v788, 1.442695
    %v790 = vpow.pop %v789
    %v791 = vadd.f32 %v790, 1.0
    %v792 = vrcp.pop %v791
    %v793 = vmul.f32 %v791, %v792
    %v794 = vsub.f32 1.0, %v793
    %v795 = vmul.f32 %v792, %v794
    %v796 = vadd.f32 %v792, %v795
    %vm797 = vweird.f32 %v791
    %vm798 = vweird.f32 %v792
    %vm799 = vmor %vm797, %vm798
    %v800 = vsel %vm799, %v792, %v796
    %v801 = vand.u32 2147483647, %v791
    %vm802 = vcmp.eq.f32.partialorder %v801, 8.507059e+37
    %v803 = vand.u32 %v791, 2147483648
    %v804 = vor.u32 1.1754944e-38, %v803
    %v805 = vsel %vm802, %v804, %v800
    %v806 = vmul.f32 1.0, %v805
    %v807 = vadd.f32 %v188, %v765
    %v808 = vxor.u32 %v807, 2147483648
    %v809 = vmul.f32 %v808, 1.442695
    %v810 = vpow.pop %v809
    %v811 = vadd.f32 %v810, 1.0
    %v812 = vrcp.pop %v811
    %v813 = vmul.f32 %v811, %v812
    %v814 = vsub.f32 1.0, %v813
    %v815 = vmul.f32 %v812, %v814
    %v816 = vadd.f32 %v812, %v815
    %vm817 = vweird.f32 %v811
    %vm818 = vweird.f32 %v812
    %vm819 = vmor %vm817, %vm818
    %v820 = vsel %vm819, %v812, %v816
    %v821 = vand.u32 2147483647, %v811
    %vm822 = vcmp.eq.f32.partialorder %v821, 8.507059e+37
    %v823 = vand.u32 %v811, 2147483648
    %v824 = vor.u32 1.1754944e-38, %v823
    %v825 = vsel %vm822, %v824, %v820
    %v826 = vmul.f32 1.0, %v825
    %v827 = vadd.f32 %v785, %v242
    %v828 = vmul.f32 %v806, %v827
    %v829 = vadd.f32 %v229, %v828
    %v830 = vtanh.pop %v829
    %v831 = vsub.f32 %v724, %v830
    %v832 = vmul.f32 %v826, %v831
    %v833 = vadd.f32 %v830, %v832
    %s834 = scalar_lea.vmem %s5, 32
    %835 = vst [vmem:[%s834] sm:$0xff] %v833
    %836 = vmatpush.msra.mxu0 %v289
    %837 = vmatpush.msra.mxu0 %v286
    %838 = vmatpush.msra.mxu0 %v283
    %839 = vmatpush.msra.mxu0 %v280
    %840 = vmatpush.msra.mxu0 %v277
    %841 = vmatpush.msra.mxu0 %v274
    %842 = vmatpush.msra.mxu0 %v271
    %843 = vmatpush.msra.mxu0 %v268
    %844 = vmatpush.msra.mxu0 %v265
    %845 = vmatpush.msra.mxu0 %v262
    %846 = vmatpush.msra.mxu0 %v259
    %847 = vmatpush.msra.mxu0 %v256
    %848 = vmatpush.msra.mxu0 %v253
    %849 = vmatpush.msra.mxu0 %v250
    %850 = vmatpush.msra.mxu0 %v247
    %851 = vmatpush.msra.mxu0 %v244
    %852 = vmatmul.f32.gmra.mxu0 %v833
    %v853 = vpop.f32.mrf.mxu0
    %v854 = vadd.f32 0.0, %v853
    %855 = vdwg.mxu0
    %856 = vmatpush.msra.mxu0 %v290
    %857 = vmatpush.msra.mxu0 %v287
    %858 = vmatpush.msra.mxu0 %v284
    %859 = vmatpush.msra.mxu0 %v281
    %860 = vmatpush.msra.mxu0 %v278
    %861 = vmatpush.msra.mxu0 %v275
    %862 = vmatpush.msra.mxu0 %v272
    %863 = vmatpush.msra.mxu0 %v269
    %864 = vmatpush.msra.mxu0 %v266
    %865 = vmatpush.msra.mxu0 %v263
    %866 = vmatpush.msra.mxu0 %v260
    %867 = vmatpush.msra.mxu0 %v257
    %868 = vmatpush.msra.mxu0 %v254
    %869 = vmatpush.msra.mxu0 %v251
    %870 = vmatpush.msra.mxu0 %v248
    %871 = vmatpush.msra.mxu0 %v245
    %872 = vmatmul.f32.gmra.mxu0 %v833
    %v873 = vpop.f32.mrf.mxu0
    %v874 = vadd.f32 0.0, %v873
    %875 = vdwg.mxu0
    %876 = vmatpush.msra.mxu0 %v291
    %877 = vmatpush.msra.mxu0 %v288
    %878 = vmatpush.msra.mxu0 %v285
    %879 = vmatpush.msra.mxu0 %v282
    %880 = vmatpush.msra.mxu0 %v279
    %881 = vmatpush.msra.mxu0 %v276
    %882 = vmatpush.msra.mxu0 %v273
    %883 = vmatpush.msra.mxu0 %v270
    %884 = vmatpush.msra.mxu0 %v267
    %885 = vmatpush.msra.mxu0 %v264
    %886 = vmatpush.msra.mxu0 %v261
    %887 = vmatpush.msra.mxu0 %v258
    %888 = vmatpush.msra.mxu0 %v255
    %889 = vmatpush.msra.mxu0 %v252
    %890 = vmatpush.msra.mxu0 %v249
    %891 = vmatpush.msra.mxu0 %v246
    %892 = vmatmul.f32.gmra.mxu0 %v833
    %v893 = vpop.f32.mrf.mxu0
    %v894 = vadd.f32 0.0, %v893
    %895 = vdwg.mxu0
    %v896 = vadd.f32 %v150, %v854
    %v897 = vxor.u32 %v896, 2147483648
    %v898 = vmul.f32 %v897, 1.442695
    %v899 = vpow.pop %v898
    %v900 = vadd.f32 %v899, 1.0
    %v901 = vrcp.pop %v900
    %v902 = vmul.f32 %v900, %v901
    %v903 = vsub.f32 1.0, %v902
    %v904 = vmul.f32 %v901, %v903
    %v905 = vadd.f32 %v901, %v904
    %vm906 = vweird.f32 %v900
    %vm907 = vweird.f32 %v901
    %vm908 = vmor %vm906, %vm907
    %v909 = vsel %vm908, %v901, %v905
    %v910 = vand.u32 2147483647, %v900
    %vm911 = vcmp.eq.f32.partialorder %v910, 8.507059e+37
    %v912 = vand.u32 %v900, 2147483648
    %v913 = vor.u32 1.1754944e-38, %v912
    %v914 = vsel %vm911, %v913, %v909
    %v915 = vmul.f32 1.0, %v914
    %v916 = vadd.f32 %v191, %v874
    %v917 = vxor.u32 %v916, 2147483648
    %v918 = vmul.f32 %v917, 1.442695
    %v919 = vpow.pop %v918
    %v920 = vadd.f32 %v919, 1.0
    %v921 = vrcp.pop %v920
    %v922 = vmul.f32 %v920, %v921
    %v923 = vsub.f32 1.0, %v922
    %v924 = vmul.f32 %v921, %v923
    %v925 = vadd.f32 %v921, %v924
    %vm926 = vweird.f32 %v920
    %vm927 = vweird.f32 %v921
    %vm928 = vmor %vm926, %vm927
    %v929 = vsel %vm928, %v921, %v925
    %v930 = vand.u32 2147483647, %v920
    %vm931 = vcmp.eq.f32.partialorder %v930, 8.507059e+37
    %v932 = vand.u32 %v920, 2147483648
    %v933 = vor.u32 1.1754944e-38, %v932
    %v934 = vsel %vm931, %v933, %v929
    %v935 = vmul.f32 1.0, %v934
    %v936 = vadd.f32 %v894, %v242
    %v937 = vmul.f32 %v915, %v936
    %v938 = vadd.f32 %v232, %v937
    %v939 = vtanh.pop %v938
    %v940 = vsub.f32 %v833, %v939
    %v941 = vmul.f32 %v935, %v940
    %v942 = vadd.f32 %v939, %v941
    %s943 = scalar_lea.vmem %s5, 40
    %944 = vst [vmem:[%s943] sm:$0xff] %v942
    %945 = vmatpush.msra.mxu0 %v289
    %946 = vmatpush.msra.mxu0 %v286
    %947 = vmatpush.msra.mxu0 %v283
    %948 = vmatpush.msra.mxu0 %v280
    %949 = vmatpush.msra.mxu0 %v277
    %950 = vmatpush.msra.mxu0 %v274
    %951 = vmatpush.msra.mxu0 %v271
    %952 = vmatpush.msra.mxu0 %v268
    %953 = vmatpush.msra.mxu0 %v265
    %954 = vmatpush.msra.mxu0 %v262
    %955 = vmatpush.msra.mxu0 %v259
    %956 = vmatpush.msra.mxu0 %v256
    %957 = vmatpush.msra.mxu0 %v253
    %958 = vmatpush.msra.mxu0 %v250
    %959 = vmatpush.msra.mxu0 %v247
    %960 = vmatpush.msra.mxu0 %v244
    %961 = vmatmul.f32.gmra.mxu0 %v942
    %v962 = vpop.f32.mrf.mxu0
    %v963 = vadd.f32 0.0, %v962
    %964 = vdwg.mxu0
    %965 = vmatpush.msra.mxu0 %v290
    %966 = vmatpush.msra.mxu0 %v287
    %967 = vmatpush.msra.mxu0 %v284
    %968 = vmatpush.msra.mxu0 %v281
    %969 = vmatpush.msra.mxu0 %v278
    %970 = vmatpush.msra.mxu0 %v275
    %971 = vmatpush.msra.mxu0 %v272
    %972 = vmatpush.msra.mxu0 %v269
    %973 = vmatpush.msra.mxu0 %v266
    %974 = vmatpush.msra.mxu0 %v263
    %975 = vmatpush.msra.mxu0 %v260
    %976 = vmatpush.msra.mxu0 %v257
    %977 = vmatpush.msra.mxu0 %v254
    %978 = vmatpush.msra.mxu0 %v251
    %979 = vmatpush.msra.mxu0 %v248
    %980 = vmatpush.msra.mxu0 %v245
    %981 = vmatmul.f32.gmra.mxu0 %v942
    %v982 = vpop.f32.mrf.mxu0
    %v983 = vadd.f32 0.0, %v982
    %984 = vdwg.mxu0
    %985 = vmatpush.msra.mxu0 %v291
    %986 = vmatpush.msra.mxu0 %v288
    %987 = vmatpush.msra.mxu0 %v285
    %988 = vmatpush.msra.mxu0 %v282
    %989 = vmatpush.msra.mxu0 %v279
    %990 = vmatpush.msra.mxu0 %v276
    %991 = vmatpush.msra.mxu0 %v273
    %992 = vmatpush.msra.mxu0 %v270
    %993 = vmatpush.msra.mxu0 %v267
    %994 = vmatpush.msra.mxu0 %v264
    %995 = vmatpush.msra.mxu0 %v261
    %996 = vmatpush.msra.mxu0 %v258
    %997 = vmatpush.msra.mxu0 %v255
    %998 = vmatpush.msra.mxu0 %v252
    %999 = vmatpush.msra.mxu0 %v249
    %1000 = vmatpush.msra.mxu0 %v246
    %1001 = vmatmul.f32.gmra.mxu0 %v942
    %v1002 = vpop.f32.mrf.mxu0
    %v1003 = vadd.f32 0.0, %v1002
    %1004 = vdwg.mxu0
    %v1005 = vadd.f32 %v153, %v963
    %v1006 = vxor.u32 %v1005, 2147483648
    %v1007 = vmul.f32 %v1006, 1.442695
    %v1008 = vpow.pop %v1007
    %v1009 = vadd.f32 %v1008, 1.0
    %v1010 = vrcp.pop %v1009
    %v1011 = vmul.f32 %v1009, %v1010
    %v1012 = vsub.f32 1.0, %v1011
    %v1013 = vmul.f32 %v1010, %v1012
    %v1014 = vadd.f32 %v1010, %v1013
    %vm1015 = vweird.f32 %v1009
    %vm1016 = vweird.f32 %v1010
    %vm1017 = vmor %vm1015, %vm1016
    %v1018 = vsel %vm1017, %v1010, %v1014
    %v1019 = vand.u32 2147483647, %v1009
    %vm1020 = vcmp.eq.f32.partialorder %v1019, 8.507059e+37
    %v1021 = vand.u32 %v1009, 2147483648
    %v1022 = vor.u32 1.1754944e-38, %v1021
    %v1023 = vsel %vm1020, %v1022, %v1018
    %v1024 = vmul.f32 1.0, %v1023
    %v1025 = vadd.f32 %v194, %v983
    %v1026 = vxor.u32 %v1025, 2147483648
    %v1027 = vmul.f32 %v1026, 1.442695
    %v1028 = vpow.pop %v1027
    %v1029 = vadd.f32 %v1028, 1.0
    %v1030 = vrcp.pop %v1029
    %v1031 = vmul.f32 %v1029, %v1030
    %v1032 = vsub.f32 1.0, %v1031
    %v1033 = vmul.f32 %v1030, %v1032
    %v1034 = vadd.f32 %v1030, %v1033
    %vm1035 = vweird.f32 %v1029
    %vm1036 = vweird.f32 %v1030
    %vm1037 = vmor %vm1035, %vm1036
    %v1038 = vsel %vm1037, %v1030, %v1034
    %v1039 = vand.u32 2147483647, %v1029
    %vm1040 = vcmp.eq.f32.partialorder %v1039, 8.507059e+37
    %v1041 = vand.u32 %v1029, 2147483648
    %v1042 = vor.u32 1.1754944e-38, %v1041
    %v1043 = vsel %vm1040, %v1042, %v1038
    %v1044 = vmul.f32 1.0, %v1043
    %v1045 = vadd.f32 %v1003, %v242
    %v1046 = vmul.f32 %v1024, %v1045
    %v1047 = vadd.f32 %v235, %v1046
    %v1048 = vtanh.pop %v1047
    %v1049 = vsub.f32 %v942, %v1048
    %v1050 = vmul.f32 %v1044, %v1049
    %v1051 = vadd.f32 %v1048, %v1050
    %s1052 = scalar_lea.vmem %s5, 48
    %1053 = vst [vmem:[%s1052] sm:$0xff] %v1051
    %1054 = vmatpush.msra.mxu0 %v289
    %1055 = vmatpush.msra.mxu0 %v286
    %1056 = vmatpush.msra.mxu0 %v283
    %1057 = vmatpush.msra.mxu0 %v280
    %1058 = vmatpush.msra.mxu0 %v277
    %1059 = vmatpush.msra.mxu0 %v274
    %1060 = vmatpush.msra.mxu0 %v271
    %1061 = vmatpush.msra.mxu0 %v268
    %1062 = vmatpush.msra.mxu0 %v265
    %1063 = vmatpush.msra.mxu0 %v262
    %1064 = vmatpush.msra.mxu0 %v259
    %1065 = vmatpush.msra.mxu0 %v256
    %1066 = vmatpush.msra.mxu0 %v253
    %1067 = vmatpush.msra.mxu0 %v250
    %1068 = vmatpush.msra.mxu0 %v247
    %1069 = vmatpush.msra.mxu0 %v244
    %1070 = vmatmul.f32.gmra.mxu0 %v1051
    %v1071 = vpop.f32.mrf.mxu0
    %v1072 = vadd.f32 0.0, %v1071
    %1073 = vdwg.mxu0
    %1074 = vmatpush.msra.mxu0 %v290
    %1075 = vmatpush.msra.mxu0 %v287
    %1076 = vmatpush.msra.mxu0 %v284
    %1077 = vmatpush.msra.mxu0 %v281
    %1078 = vmatpush.msra.mxu0 %v278
    %1079 = vmatpush.msra.mxu0 %v275
    %1080 = vmatpush.msra.mxu0 %v272
    %1081 = vmatpush.msra.mxu0 %v269
    %1082 = vmatpush.msra.mxu0 %v266
    %1083 = vmatpush.msra.mxu0 %v263
    %1084 = vmatpush.msra.mxu0 %v260
    %1085 = vmatpush.msra.mxu0 %v257
    %1086 = vmatpush.msra.mxu0 %v254
    %1087 = vmatpush.msra.mxu0 %v251
    %1088 = vmatpush.msra.mxu0 %v248
    %1089 = vmatpush.msra.mxu0 %v245
    %1090 = vmatmul.f32.gmra.mxu0 %v1051
    %v1091 = vpop.f32.mrf.mxu0
    %v1092 = vadd.f32 0.0, %v1091
    %1093 = vdwg.mxu0
    %1094 = vmatpush.msra.mxu0 %v291
    %1095 = vmatpush.msra.mxu0 %v288
    %1096 = vmatpush.msra.mxu0 %v285
    %1097 = vmatpush.msra.mxu0 %v282
    %1098 = vmatpush.msra.mxu0 %v279
    %1099 = vmatpush.msra.mxu0 %v276
    %1100 = vmatpush.msra.mxu0 %v273
    %1101 = vmatpush.msra.mxu0 %v270
    %1102 = vmatpush.msra.mxu0 %v267
    %1103 = vmatpush.msra.mxu0 %v264
    %1104 = vmatpush.msra.mxu0 %v261
    %1105 = vmatpush.msra.mxu0 %v258
    %1106 = vmatpush.msra.mxu0 %v255
    %1107 = vmatpush.msra.mxu0 %v252
    %1108 = vmatpush.msra.mxu0 %v249
    %1109 = vmatpush.msra.mxu0 %v246
    %1110 = vmatmul.f32.gmra.mxu0 %v1051
    %v1111 = vpop.f32.mrf.mxu0
    %v1112 = vadd.f32 0.0, %v1111
    %1113 = vdwg.mxu0
    %v1114 = vadd.f32 %v156, %v1072
    %v1115 = vxor.u32 %v1114, 2147483648
    %v1116 = vmul.f32 %v1115, 1.442695
    %v1117 = vpow.pop %v1116
    %v1118 = vadd.f32 %v1117, 1.0
    %v1119 = vrcp.pop %v1118
    %v1120 = vmul.f32 %v1118, %v1119
    %v1121 = vsub.f32 1.0, %v1120
    %v1122 = vmul.f32 %v1119, %v1121
    %v1123 = vadd.f32 %v1119, %v1122
    %vm1124 = vweird.f32 %v1118
    %vm1125 = vweird.f32 %v1119
    %vm1126 = vmor %vm1124, %vm1125
    %v1127 = vsel %vm1126, %v1119, %v1123
    %v1128 = vand.u32 2147483647, %v1118
    %vm1129 = vcmp.eq.f32.partialorder %v1128, 8.507059e+37
    %v1130 = vand.u32 %v1118, 2147483648
    %v1131 = vor.u32 1.1754944e-38, %v1130
    %v1132 = vsel %vm1129, %v1131, %v1127
    %v1133 = vmul.f32 1.0, %v1132
    %v1134 = vadd.f32 %v197, %v1092
    %v1135 = vxor.u32 %v1134, 2147483648
    %v1136 = vmul.f32 %v1135, 1.442695
    %v1137 = vpow.pop %v1136
    %v1138 = vadd.f32 %v1137, 1.0
    %v1139 = vrcp.pop %v1138
    %v1140 = vmul.f32 %v1138, %v1139
    %v1141 = vsub.f32 1.0, %v1140
    %v1142 = vmul.f32 %v1139, %v1141
    %v1143 = vadd.f32 %v1139, %v1142
    %vm1144 = vweird.f32 %v1138
    %vm1145 = vweird.f32 %v1139
    %vm1146 = vmor %vm1144, %vm1145
    %v1147 = vsel %vm1146, %v1139, %v1143
    %v1148 = vand.u32 2147483647, %v1138
    %vm1149 = vcmp.eq.f32.partialorder %v1148, 8.507059e+37
    %v1150 = vand.u32 %v1138, 2147483648
    %v1151 = vor.u32 1.1754944e-38, %v1150
    %v1152 = vsel %vm1149, %v1151, %v1147
    %v1153 = vmul.f32 1.0, %v1152
    %v1154 = vadd.f32 %v1112, %v242
    %v1155 = vmul.f32 %v1133, %v1154
    %v1156 = vadd.f32 %v238, %v1155
    %v1157 = vtanh.pop %v1156
    %v1158 = vsub.f32 %v1051, %v1157
    %v1159 = vmul.f32 %v1153, %v1158
    %v1160 = vadd.f32 %v1157, %v1159
    %s1161 = scalar_lea.vmem %s5, 56
    %1162 = vst [vmem:[%s1161] sm:$0xff] %v1160
    // Predicated region
    $region30: #{bidirectional_gru.1} parent=1 // pred_check
      _
    $region31: #{bidirectional_gru.1} parent=1 // pred_check_branch
      %1164 = sbr.rel (0) target = $region33
    $region32: #{bidirectional_gru.1} parent=1 // pred_region
      _
    $region33: #{bidirectional_gru.1} parent=1 // pred_fallthru
      _
    // Predicated region
    $region34: #{bidirectional_gru.1} parent=1 // pred_check
      _
    $region35: #{bidirectional_gru.1} parent=1 // pred_check_branch
      %1166 = sbr.rel (0) target = $region37
    $region36: #{bidirectional_gru.1} parent=1 // pred_region
      _
    $region37: #{bidirectional_gru.1} parent=1 // pred_fallthru
      _
    %1167 = vsyncpa [#allocation3], 1
    %1168 = vsyncpa [#allocation5], 1

</llo_original>
